<compile_context>
chip_gen: v7x
topology: tpu7x:2x2x1
jax: 0.10.0
libtpu: 0.0.40
codegen_flags: <defaults>
</compile_context>

<pallas_src>
import jax
import jax.numpy as jnp
import numpy as np
from jax import lax
from jax.experimental import pallas as pl
from jax.experimental.pallas import tpu as pltpu

NUM_CLASSES = 10
IMG_SIZE = 28
_W_PAD = 32            # input width zero-padded 28 -> 32 (lane staging blocks)
_OUT_PAD = 128         # lane-dense logits store; sliced back to NUM_CLASSES


# ----------------------------------------------------------------------------
# Fused Pallas kernel (one batch tile per grid step)
# ----------------------------------------------------------------------------
def _charcnn_kernel(x_ref, m1_ref, b1_ref, m2_ref, b2_ref, k1_ref,
                    fb1_ref, fw2_ref, fb2_ref, fw3_ref, fb3_ref,
                    o_ref, s1_ref, s2_ref, s3_ref):
    """CharCNN forward for one batch tile.

    x_ref : (28, bt, 32)  input images, layout (H, batch, W_padded)
    o_ref : (bt, 128)     logits (columns >= NUM_CLASSES are zero)
    s1/s2/s3 : VMEM staging scratches for the three merged GEMMs.

    Activations are 2D matrices: rows = (spatial_row, batch) with batch minor
    (bt is a multiple of 8, so all row merges/splits are tile aligned), lanes
    = (spatial_col, channel) interleaved.
    """
    bt = x_ref.shape[1]
    f32 = jnp.float32

    # ---- conv1 (1->6, k=5, valid) + ReLU: one merged banded GEMM -----------
    # stage 5 row-shifted copies of the input at 32-lane offsets
    x2 = x_ref[...].reshape(28 * bt, _W_PAD)                   # rows (h, b)
    for kh in range(5):
        s1_ref[:, kh * _W_PAD:(kh + 1) * _W_PAD] = x2[kh * bt:(kh + 24) * bt, :]
    y1 = jnp.maximum(
        jnp.dot(s1_ref[...], m1_ref[...], preferred_element_type=f32)
        + b1_ref[...], 0.0)                                    # (24*bt, 144)

    # ---- avgpool1 height half (width half + 0.25 folded into m2) ----------
    z = y1.reshape(12, 2, bt, 144)                             # tile-aligned split
    y1s = (z[:, 0] + z[:, 1]).reshape(12 * bt, 144)            # rows (u, b)

    # ---- conv2 (6->16, k=5) + pool1-width + ReLU: one merged banded GEMM ---
    for kh in range(5):
        s2_ref[:, kh * 144:(kh + 1) * 144] = y1s[kh * bt:(kh + 8) * bt, :]
    y2 = jnp.maximum(
        jnp.dot(s2_ref[...], m2_ref[...], preferred_element_type=f32)
        + b2_ref[...], 0.0)                                    # (8*bt, 128)

    # ---- fc1 (+ avgpool2 + torch CHW flatten folded into k1) --------------
    # stage the 8 row bands of y2 at 128-lane-aligned offsets -> (bt, 1024)
    for i in range(8):
        s3_ref[:, i * 128:(i + 1) * 128] = y2[i * bt:(i + 1) * bt, :]
    h1 = jnp.maximum(
        jnp.dot(s3_ref[...], k1_ref[...], preferred_element_type=f32)
        + fb1_ref[...], 0.0)                                   # (bt, 120)

    # ---- fc2 + ReLU, fc3 (lane-padded to 128) ------------------------------
    h2 = jnp.maximum(
        jnp.dot(h1, fw2_ref[...], preferred_element_type=f32)
        + fb2_ref[...], 0.0)                                   # (bt, 84)
    logits = (jnp.dot(h2, fw3_ref[...], preferred_element_type=f32)
              + fb3_ref[...])                                  # (bt, 128)
    o_ref[...] = logits.astype(o_ref.dtype)


# ----------------------------------------------------------------------------
# One-time host-side weight preparation (merged banded conv matrices with the
# pooling and flatten folded in, lane padding).  Done once, outside jit.
# ----------------------------------------------------------------------------
def prepare_params(params):
    (w1, b1, w2, b2, fw1, fb1, fw2, fb2, fw3, fb3) = [
        np.asarray(p, np.float32) for p in params]

    # conv1 merged band matrix: M1P[kh*32 + w, j*6 + c] = w1[c,0,kh,w-j]
    m1p = np.zeros((5, _W_PAD, 24 * 6), np.float32)
    for kh in range(5):
        for j in range(24):
            for kw in range(5):
                m1p[kh, j + kw, j * 6:(j + 1) * 6] = w1[:, 0, kh, kw]
    m1p = m1p.reshape(5 * _W_PAD, 144)
    b1t = np.tile(b1, 24)[None, :]                               # (1, 144)

    # conv2 merged band matrix with pool1 width half (and 0.25) folded in:
    # M2P[kh*144 + j*6 + ci, jo*16 + co] = 0.25 * w2[co,ci,kh, j//2 - jo]
    m2p = np.zeros((5, 24, 6, 8, 16), np.float32)
    for kh in range(5):
        for j in range(24):
            for jo in range(8):
                kw = j // 2 - jo
                if 0 <= kw <= 4:
                    m2p[kh, j, :, jo, :] = 0.25 * w2[:, :, kh, kw].T
    m2p = m2p.reshape(5 * 144, 128)
    b2t = np.tile(b2, 8)[None, :]                                # (1, 128)

    # fc1 weight with pool2 (0.25, both halves) and torch CHW flatten folded:
    # K1[i*128 + jo*16 + co, n] = 0.25 * fw1[n, co*16 + (i//2)*4 + (jo//2)]
    k1 = np.zeros((8, 8, 16, 120), np.float32)
    for i in range(8):
        for jo in range(8):
            for co in range(16):
                k1[i, jo, co, :] = 0.25 * fw1[:, co * 16 + (i // 2) * 4 + (jo // 2)]
    k1 = k1.reshape(8 * 128, 120)

    fw2t = np.ascontiguousarray(fw2.T)                           # (120, 84)
    fw3p = np.zeros((84, _OUT_PAD), np.float32)
    fw3p[:, :NUM_CLASSES] = fw3.T
    fb3p = np.zeros((1, _OUT_PAD), np.float32)
    fb3p[0, :NUM_CLASSES] = fb3

    prep = (m1p, b1t, m2p, b2t, k1,
            fb1[None, :], fw2t, fb2[None, :], fw3p, fb3p)
    return tuple(jnp.asarray(a) for a in prep)


# ----------------------------------------------------------------------------
# Wrapper: batch padding/tiling + pallas_call
# ----------------------------------------------------------------------------
def charcnn_pallas(x_nchw, prep):
    bsz = x_nchw.shape[0]
    # Batch tile: ~ceil(batch/2) rounded up to a multiple of 8, capped at 128.
    # Keeps the grid length >= 2 whenever the batch allows so v7x's two
    # TensorCores both get work; v5e/v6e simply loop over the grid.
    bt = min(128, max(8, ((bsz + 15) // 16) * 8))
    nb = -(-bsz // bt)
    b_pad = nb * bt

    x = x_nchw.reshape(bsz, IMG_SIZE, IMG_SIZE)
    x = jnp.pad(x, ((0, b_pad - bsz), (0, 0), (0, _W_PAD - IMG_SIZE)))
    xt = jnp.transpose(x, (1, 0, 2))     # (28, b_pad, 32): batch on dim 1

    # Weights: full-array blocks, constant index_map, single-buffered (their
    # block index never changes, so no point double-buffering them).
    w_specs = [pl.BlockSpec(p.shape, lambda i: (0, 0),
                            pipeline_mode=pl.Buffered(1)) for p in prep]

    flops = 2 * b_pad * (24 * 24 * 25 * 6 + 8 * 8 * 150 * 16
                         + 256 * 120 + 120 * 84 + 84 * NUM_CLASSES)
    bytes_accessed = 4 * (int(xt.size) + b_pad * _OUT_PAD
                          + sum(int(p.size) for p in prep))

    out = pl.pallas_call(
        _charcnn_kernel,
        out_shape=jax.ShapeDtypeStruct((b_pad, _OUT_PAD), jnp.float32),
        grid=(nb,),
        in_specs=[pl.BlockSpec((IMG_SIZE, bt, _W_PAD), lambda i: (0, i, 0))]
                 + w_specs,
        out_specs=pl.BlockSpec((bt, _OUT_PAD), lambda i: (i, 0)),
        scratch_shapes=[pltpu.VMEM((24 * bt, 5 * _W_PAD), jnp.float32),  # conv1 stage
                        pltpu.VMEM((8 * bt, 5 * 144), jnp.float32),      # conv2 stage
                        pltpu.VMEM((bt, 8 * 128), jnp.float32)],         # fc1 stage
        compiler_params=pltpu.CompilerParams(
            dimension_semantics=("parallel",)),
        cost_estimate=pl.CostEstimate(flops=flops, transcendentals=0,
                                      bytes_accessed=bytes_accessed),
    )(xt, *prep)
    return out[:bsz, :NUM_CLASSES]


# ----------------------------------------------------------------------------
# Pure-JAX reference (mirrors the PyTorch forward, NCHW throughout)
# ----------------------------------------------------------------------------
def charcnn_reference(x, params):
    (w1, b1, w2, b2, fw1, fb1, fw2, fb2, fw3, fb3) = params
    hi = lax.Precision.HIGHEST

    def conv(z, w, b):
        y = lax.conv_general_dilated(z, w, (1, 1), "VALID",
                                     dimension_numbers=("NCHW", "OIHW", "NCHW"),
                                     precision=hi)
        return y + b[None, :, None, None]

    def pool(z):
        return lax.reduce_window(z, 0.0, lax.add,
                                 (1, 1, 2, 2), (1, 1, 2, 2), "VALID") / 4.0

    mm = lambda a, b: jnp.dot(a, b, precision=hi)
    y = pool(jax.nn.relu(conv(x, w1, b1)))
    y = pool(jax.nn.relu(conv(y, w2, b2)))
    y = y.reshape(y.shape[0], -1)
    y = jax.nn.relu(mm(y, fw1.T) + fb1)
    y = jax.nn.relu(mm(y, fw2.T) + fb2)
    return mm(y, fw3.T) + fb3


def init_params(key):
    ks = jax.random.split(key, 10)
    s = 0.1
    w1 = s * jax.random.normal(ks[0], (6, 1, 5, 5), jnp.float32)
    b1 = s * jax.random.normal(ks[1], (6,), jnp.float32)
    w2 = s * jax.random.normal(ks[2], (16, 6, 5, 5), jnp.float32)
    b2 = s * jax.random.normal(ks[3], (16,), jnp.float32)
    fw1 = s * jax.random.normal(ks[4], (120, 256), jnp.float32)
    fb1 = s * jax.random.normal(ks[5], (120,), jnp.float32)
    fw2 = s * jax.random.normal(ks[6], (84, 120), jnp.float32)
    fb2 = s * jax.random.normal(ks[7], (84,), jnp.float32)
    fw3 = s * jax.random.normal(ks[8], (NUM_CLASSES, 84), jnp.float32)
    fb3 = s * jax.random.normal(ks[9], (NUM_CLASSES,), jnp.float32)
    return (w1, b1, w2, b2, fw1, fb1, fw2, fb2, fw3, fb3)


if __name__ == "__main__":
    key = jax.random.PRNGKey(0)
    pkey, xkey = jax.random.split(key)
    params = init_params(pkey)
    prep = prepare_params(params)          # one-time weight preprocessing

    batch = 2
    x = jax.random.normal(xkey, (batch, 1, IMG_SIZE, IMG_SIZE), jnp.float32)

    logits = jax.block_until_ready(jax.jit(charcnn_pallas)(x, prep))
    ref = jax.block_until_ready(jax.jit(charcnn_reference)(x, params))

    assert logits.shape == (batch, NUM_CLASSES)
    np.testing.assert_allclose(np.asarray(logits), np.asarray(ref),
                               rtol=2e-3, atol=2e-3)
    print("KERNEL_OK")
</pallas_src>

<mosaic_0001>
module attributes {stable_mosaic.version = 11 : i64} {
  func.func @_charcnn_kernel(%arg0: i32, %arg1: memref<28x8x32xf32, #tpu.memory_space<vmem>>, %arg2: memref<160x144xf32, #tpu.memory_space<vmem>>, %arg3: memref<1x144xf32, #tpu.memory_space<vmem>>, %arg4: memref<720x128xf32, #tpu.memory_space<vmem>>, %arg5: memref<1x128xf32, #tpu.memory_space<vmem>>, %arg6: memref<1024x120xf32, #tpu.memory_space<vmem>>, %arg7: memref<1x120xf32, #tpu.memory_space<vmem>>, %arg8: memref<120x84xf32, #tpu.memory_space<vmem>>, %arg9: memref<1x84xf32, #tpu.memory_space<vmem>>, %arg10: memref<84x128xf32, #tpu.memory_space<vmem>>, %arg11: memref<1x128xf32, #tpu.memory_space<vmem>>, %arg12: memref<8x128xf32, #tpu.memory_space<vmem>>, %arg13: memref<192x160xf32, #tpu.memory_space<vmem>>, %arg14: memref<64x720xf32, #tpu.memory_space<vmem>>, %arg15: memref<8x1024xf32, #tpu.memory_space<vmem>>) attributes {dimension_semantics = [#tpu.dimension_semantics<parallel>], iteration_bounds = array<i64: 1>, scalar_prefetch = 0 : i64, scratch_operands = 3 : i64, tpu.core_type = #tpu.core_type<tc>, window_params = [{transform_indices = @transform_0, window_bounds = array<i64: 28, 8, 32>}, {pipeline_mode = #tpu.pipeline_mode<synchronous>, transform_indices = @transform_1, window_bounds = array<i64: 160, 144>}, {pipeline_mode = #tpu.pipeline_mode<synchronous>, transform_indices = @transform_2, window_bounds = array<i64: 1, 144>}, {pipeline_mode = #tpu.pipeline_mode<synchronous>, transform_indices = @transform_3, window_bounds = array<i64: 720, 128>}, {pipeline_mode = #tpu.pipeline_mode<synchronous>, transform_indices = @transform_4, window_bounds = array<i64: 1, 128>}, {pipeline_mode = #tpu.pipeline_mode<synchronous>, transform_indices = @transform_5, window_bounds = array<i64: 1024, 120>}, {pipeline_mode = #tpu.pipeline_mode<synchronous>, transform_indices = @transform_6, window_bounds = array<i64: 1, 120>}, {pipeline_mode = #tpu.pipeline_mode<synchronous>, transform_indices = @transform_7, window_bounds = array<i64: 120, 84>}, {pipeline_mode = #tpu.pipeline_mode<synchronous>, transform_indices = @transform_8, window_bounds = array<i64: 1, 84>}, {pipeline_mode = #tpu.pipeline_mode<synchronous>, transform_indices = @transform_9, window_bounds = array<i64: 84, 128>}, {pipeline_mode = #tpu.pipeline_mode<synchronous>, transform_indices = @transform_10, window_bounds = array<i64: 1, 128>}, {transform_indices = @transform_11, window_bounds = array<i64: 8, 128>}]} {
    %c0 = arith.constant 0 : index
    %c0_0 = arith.constant 0 : index
    %c0_1 = arith.constant 0 : index
    %0 = vector.load %arg1[%c0, %c0_0, %c0_1] : memref<28x8x32xf32, #tpu.memory_space<vmem>>, vector<28x8x32xf32>
    %1 = vector.shape_cast %0 : vector<28x8x32xf32> to vector<224x32xf32>
    %2 = vector.extract_strided_slice %1 {offsets = [0, 0], sizes = [192, 32], strides = [1, 1]} : vector<224x32xf32> to vector<192x32xf32>
    %c0_2 = arith.constant 0 : index
    %c0_3 = arith.constant 0 : index
    %3 = vector.load %arg13[%c0_2, %c0_3] : memref<192x160xf32, #tpu.memory_space<vmem>>, vector<192x32xf32>
    tpu.vector_store %arg13[%c0_2, %c0_3], %2 {strides = array<i32>} : memref<192x160xf32, #tpu.memory_space<vmem>>, vector<192x32xf32>,
    %4 = vector.extract_strided_slice %1 {offsets = [8, 0], sizes = [192, 32], strides = [1, 1]} : vector<224x32xf32> to vector<192x32xf32>
    %c0_4 = arith.constant 0 : index
    %c32 = arith.constant 32 : index
    %5 = vector.load %arg13[%c0_4, %c32] : memref<192x160xf32, #tpu.memory_space<vmem>>, vector<192x32xf32>
    tpu.vector_store %arg13[%c0_4, %c32], %4 {strides = array<i32>} : memref<192x160xf32, #tpu.memory_space<vmem>>, vector<192x32xf32>,
    %6 = vector.extract_strided_slice %1 {offsets = [16, 0], sizes = [192, 32], strides = [1, 1]} : vector<224x32xf32> to vector<192x32xf32>
    %c0_5 = arith.constant 0 : index
    %c64 = arith.constant 64 : index
    %7 = vector.load %arg13[%c0_5, %c64] : memref<192x160xf32, #tpu.memory_space<vmem>>, vector<192x32xf32>
    tpu.vector_store %arg13[%c0_5, %c64], %6 {strides = array<i32>} : memref<192x160xf32, #tpu.memory_space<vmem>>, vector<192x32xf32>,
    %8 = vector.extract_strided_slice %1 {offsets = [24, 0], sizes = [192, 32], strides = [1, 1]} : vector<224x32xf32> to vector<192x32xf32>
    %c0_6 = arith.constant 0 : index
    %c96 = arith.constant 96 : index
    %9 = vector.load %arg13[%c0_6, %c96] : memref<192x160xf32, #tpu.memory_space<vmem>>, vector<192x32xf32>
    tpu.vector_store %arg13[%c0_6, %c96], %8 {strides = array<i32>} : memref<192x160xf32, #tpu.memory_space<vmem>>, vector<192x32xf32>,
    %10 = vector.extract_strided_slice %1 {offsets = [32, 0], sizes = [192, 32], strides = [1, 1]} : vector<224x32xf32> to vector<192x32xf32>
    %c0_7 = arith.constant 0 : index
    %c128 = arith.constant 128 : index
    %11 = vector.load %arg13[%c0_7, %c128] : memref<192x160xf32, #tpu.memory_space<vmem>>, vector<192x32xf32>
    tpu.vector_store %arg13[%c0_7, %c128], %10 {strides = array<i32>} : memref<192x160xf32, #tpu.memory_space<vmem>>, vector<192x32xf32>,
    %c0_8 = arith.constant 0 : index
    %c0_9 = arith.constant 0 : index
    %12 = vector.load %arg13[%c0_8, %c0_9] : memref<192x160xf32, #tpu.memory_space<vmem>>, vector<192x160xf32>
    %c0_10 = arith.constant 0 : index
    %c0_11 = arith.constant 0 : index
    %13 = vector.load %arg2[%c0_10, %c0_11] : memref<160x144xf32, #tpu.memory_space<vmem>>, vector<160x144xf32>
    %cst = arith.constant dense<0.000000e+00> : vector<192x144xf32>
    %14 = tpu.matmul %12, %13, %cst {dimension_numbers = #tpu.dot_dimension_numbers<[1], [0], [0], [1], [0, 0, 1, 1], [], []>} : vector<192x160xf32>, vector<160x144xf32>, vector<192x144xf32> -> vector<192x144xf32>
    %c0_12 = arith.constant 0 : index
    %c0_13 = arith.constant 0 : index
    %15 = vector.load %arg3[%c0_12, %c0_13] : memref<1x144xf32, #tpu.memory_space<vmem>>, vector<1x144xf32>
    %16 = vector.broadcast %15 : vector<1x144xf32> to vector<192x144xf32>
    %17 = arith.addf %14, %16 : vector<192x144xf32>
    %cst_14 = arith.constant 0.000000e+00 : f32
    %18 = vector.broadcast %cst_14 : f32 to vector<192x144xf32>
    %19 = arith.maximumf %17, %18 : vector<192x144xf32>
    %20 = vector.shape_cast %19 : vector<192x144xf32> to vector<12x2x8x144xf32>
    %21 = vector.extract_strided_slice %20 {offsets = [0, 0, 0, 0], sizes = [12, 1, 8, 144], strides = [1, 1, 1, 1]} : vector<12x2x8x144xf32> to vector<12x1x8x144xf32>
    %22 = vector.shape_cast %21 : vector<12x1x8x144xf32> to vector<12x8x144xf32>
    %23 = vector.extract_strided_slice %20 {offsets = [0, 1, 0, 0], sizes = [12, 1, 8, 144], strides = [1, 1, 1, 1]} : vector<12x2x8x144xf32> to vector<12x1x8x144xf32>
    %24 = vector.shape_cast %23 : vector<12x1x8x144xf32> to vector<12x8x144xf32>
    %25 = arith.addf %22, %24 : vector<12x8x144xf32>
    %26 = vector.shape_cast %25 : vector<12x8x144xf32> to vector<96x144xf32>
    %27 = vector.extract_strided_slice %26 {offsets = [0, 0], sizes = [64, 144], strides = [1, 1]} : vector<96x144xf32> to vector<64x144xf32>
    %c0_15 = arith.constant 0 : index
    %c0_16 = arith.constant 0 : index
    %28 = vector.load %arg14[%c0_15, %c0_16] : memref<64x720xf32, #tpu.memory_space<vmem>>, vector<64x144xf32>
    tpu.vector_store %arg14[%c0_15, %c0_16], %27 {strides = array<i32>} : memref<64x720xf32, #tpu.memory_space<vmem>>, vector<64x144xf32>,
    %29 = vector.extract_strided_slice %26 {offsets = [8, 0], sizes = [64, 144], strides = [1, 1]} : vector<96x144xf32> to vector<64x144xf32>
    %c0_17 = arith.constant 0 : index
    %c144 = arith.constant 144 : index
    %30 = vector.load %arg14[%c0_17, %c144] : memref<64x720xf32, #tpu.memory_space<vmem>>, vector<64x144xf32>
    tpu.vector_store %arg14[%c0_17, %c144], %29 {strides = array<i32>} : memref<64x720xf32, #tpu.memory_space<vmem>>, vector<64x144xf32>,
    %31 = vector.extract_strided_slice %26 {offsets = [16, 0], sizes = [64, 144], strides = [1, 1]} : vector<96x144xf32> to vector<64x144xf32>
    %c0_18 = arith.constant 0 : index
    %c288 = arith.constant 288 : index
    %32 = vector.load %arg14[%c0_18, %c288] : memref<64x720xf32, #tpu.memory_space<vmem>>, vector<64x144xf32>
    tpu.vector_store %arg14[%c0_18, %c288], %31 {strides = array<i32>} : memref<64x720xf32, #tpu.memory_space<vmem>>, vector<64x144xf32>,
    %33 = vector.extract_strided_slice %26 {offsets = [24, 0], sizes = [64, 144], strides = [1, 1]} : vector<96x144xf32> to vector<64x144xf32>
    %c0_19 = arith.constant 0 : index
    %c432 = arith.constant 432 : index
    %34 = vector.load %arg14[%c0_19, %c432] : memref<64x720xf32, #tpu.memory_space<vmem>>, vector<64x144xf32>
    tpu.vector_store %arg14[%c0_19, %c432], %33 {strides = array<i32>} : memref<64x720xf32, #tpu.memory_space<vmem>>, vector<64x144xf32>,
    %35 = vector.extract_strided_slice %26 {offsets = [32, 0], sizes = [64, 144], strides = [1, 1]} : vector<96x144xf32> to vector<64x144xf32>
    %c0_20 = arith.constant 0 : index
    %c576 = arith.constant 576 : index
    %36 = vector.load %arg14[%c0_20, %c576] : memref<64x720xf32, #tpu.memory_space<vmem>>, vector<64x144xf32>
    tpu.vector_store %arg14[%c0_20, %c576], %35 {strides = array<i32>} : memref<64x720xf32, #tpu.memory_space<vmem>>, vector<64x144xf32>,
    %c0_21 = arith.constant 0 : index
    %c0_22 = arith.constant 0 : index
    %37 = vector.load %arg14[%c0_21, %c0_22] : memref<64x720xf32, #tpu.memory_space<vmem>>, vector<64x720xf32>
    %c0_23 = arith.constant 0 : index
    %c0_24 = arith.constant 0 : index
    %38 = vector.load %arg4[%c0_23, %c0_24] : memref<720x128xf32, #tpu.memory_space<vmem>>, vector<720x128xf32>
    %cst_25 = arith.constant dense<0.000000e+00> : vector<64x128xf32>
    %39 = tpu.matmul %37, %38, %cst_25 {dimension_numbers = #tpu.dot_dimension_numbers<[1], [0], [0], [1], [0, 0, 1, 1], [], []>} : vector<64x720xf32>, vector<720x128xf32>, vector<64x128xf32> -> vector<64x128xf32>
    %c0_26 = arith.constant 0 : index
    %c0_27 = arith.constant 0 : index
    %40 = vector.load %arg5[%c0_26, %c0_27] : memref<1x128xf32, #tpu.memory_space<vmem>>, vector<1x128xf32>
    %41 = vector.broadcast %40 : vector<1x128xf32> to vector<64x128xf32>
    %42 = arith.addf %39, %41 : vector<64x128xf32>
    %cst_28 = arith.constant 0.000000e+00 : f32
    %43 = vector.broadcast %cst_28 : f32 to vector<64x128xf32>
    %44 = arith.maximumf %42, %43 : vector<64x128xf32>
    %45 = vector.extract_strided_slice %44 {offsets = [0, 0], sizes = [8, 128], strides = [1, 1]} : vector<64x128xf32> to vector<8x128xf32>
    %c0_29 = arith.constant 0 : index
    %c0_30 = arith.constant 0 : index
    %46 = vector.load %arg15[%c0_29, %c0_30] : memref<8x1024xf32, #tpu.memory_space<vmem>>, vector<8x128xf32>
    tpu.vector_store %arg15[%c0_29, %c0_30], %45 {strides = array<i32>} : memref<8x1024xf32, #tpu.memory_space<vmem>>, vector<8x128xf32>,
    %47 = vector.extract_strided_slice %44 {offsets = [8, 0], sizes = [8, 128], strides = [1, 1]} : vector<64x128xf32> to vector<8x128xf32>
    %c0_31 = arith.constant 0 : index
    %c128_32 = arith.constant 128 : index
    %48 = vector.load %arg15[%c0_31, %c128_32] : memref<8x1024xf32, #tpu.memory_space<vmem>>, vector<8x128xf32>
    tpu.vector_store %arg15[%c0_31, %c128_32], %47 {strides = array<i32>} : memref<8x1024xf32, #tpu.memory_space<vmem>>, vector<8x128xf32>,
    %49 = vector.extract_strided_slice %44 {offsets = [16, 0], sizes = [8, 128], strides = [1, 1]} : vector<64x128xf32> to vector<8x128xf32>
    %c0_33 = arith.constant 0 : index
    %c256 = arith.constant 256 : index
    %50 = vector.load %arg15[%c0_33, %c256] : memref<8x1024xf32, #tpu.memory_space<vmem>>, vector<8x128xf32>
    tpu.vector_store %arg15[%c0_33, %c256], %49 {strides = array<i32>} : memref<8x1024xf32, #tpu.memory_space<vmem>>, vector<8x128xf32>,
    %51 = vector.extract_strided_slice %44 {offsets = [24, 0], sizes = [8, 128], strides = [1, 1]} : vector<64x128xf32> to vector<8x128xf32>
    %c0_34 = arith.constant 0 : index
    %c384 = arith.constant 384 : index
    %52 = vector.load %arg15[%c0_34, %c384] : memref<8x1024xf32, #tpu.memory_space<vmem>>, vector<8x128xf32>
    tpu.vector_store %arg15[%c0_34, %c384], %51 {strides = array<i32>} : memref<8x1024xf32, #tpu.memory_space<vmem>>, vector<8x128xf32>,
    %53 = vector.extract_strided_slice %44 {offsets = [32, 0], sizes = [8, 128], strides = [1, 1]} : vector<64x128xf32> to vector<8x128xf32>
    %c0_35 = arith.constant 0 : index
    %c512 = arith.constant 512 : index
    %54 = vector.load %arg15[%c0_35, %c512] : memref<8x1024xf32, #tpu.memory_space<vmem>>, vector<8x128xf32>
    tpu.vector_store %arg15[%c0_35, %c512], %53 {strides = array<i32>} : memref<8x1024xf32, #tpu.memory_space<vmem>>, vector<8x128xf32>,
    %55 = vector.extract_strided_slice %44 {offsets = [40, 0], sizes = [8, 128], strides = [1, 1]} : vector<64x128xf32> to vector<8x128xf32>
    %c0_36 = arith.constant 0 : index
    %c640 = arith.constant 640 : index
    %56 = vector.load %arg15[%c0_36, %c640] : memref<8x1024xf32, #tpu.memory_space<vmem>>, vector<8x128xf32>
    tpu.vector_store %arg15[%c0_36, %c640], %55 {strides = array<i32>} : memref<8x1024xf32, #tpu.memory_space<vmem>>, vector<8x128xf32>,
    %57 = vector.extract_strided_slice %44 {offsets = [48, 0], sizes = [8, 128], strides = [1, 1]} : vector<64x128xf32> to vector<8x128xf32>
    %c0_37 = arith.constant 0 : index
    %c768 = arith.constant 768 : index
    %58 = vector.load %arg15[%c0_37, %c768] : memref<8x1024xf32, #tpu.memory_space<vmem>>, vector<8x128xf32>
    tpu.vector_store %arg15[%c0_37, %c768], %57 {strides = array<i32>} : memref<8x1024xf32, #tpu.memory_space<vmem>>, vector<8x128xf32>,
    %59 = vector.extract_strided_slice %44 {offsets = [56, 0], sizes = [8, 128], strides = [1, 1]} : vector<64x128xf32> to vector<8x128xf32>
    %c0_38 = arith.constant 0 : index
    %c896 = arith.constant 896 : index
    %60 = vector.load %arg15[%c0_38, %c896] : memref<8x1024xf32, #tpu.memory_space<vmem>>, vector<8x128xf32>
    tpu.vector_store %arg15[%c0_38, %c896], %59 {strides = array<i32>} : memref<8x1024xf32, #tpu.memory_space<vmem>>, vector<8x128xf32>,
    %c0_39 = arith.constant 0 : index
    %c0_40 = arith.constant 0 : index
    %61 = vector.load %arg15[%c0_39, %c0_40] : memref<8x1024xf32, #tpu.memory_space<vmem>>, vector<8x1024xf32>
    %c0_41 = arith.constant 0 : index
    %c0_42 = arith.constant 0 : index
    %62 = vector.load %arg6[%c0_41, %c0_42] : memref<1024x120xf32, #tpu.memory_space<vmem>>, vector<1024x120xf32>
    %cst_43 = arith.constant dense<0.000000e+00> : vector<8x120xf32>
    %63 = tpu.matmul %61, %62, %cst_43 {dimension_numbers = #tpu.dot_dimension_numbers<[1], [0], [0], [1], [0, 0, 1, 1], [], []>} : vector<8x1024xf32>, vector<1024x120xf32>, vector<8x120xf32> -> vector<8x120xf32>
    %c0_44 = arith.constant 0 : index
    %c0_45 = arith.constant 0 : index
    %64 = vector.load %arg7[%c0_44, %c0_45] : memref<1x120xf32, #tpu.memory_space<vmem>>, vector<1x120xf32>
    %65 = vector.broadcast %64 : vector<1x120xf32> to vector<8x120xf32>
    %66 = arith.addf %63, %65 : vector<8x120xf32>
    %cst_46 = arith.constant 0.000000e+00 : f32
    %67 = vector.broadcast %cst_46 : f32 to vector<8x120xf32>
    %68 = arith.maximumf %66, %67 : vector<8x120xf32>
    %c0_47 = arith.constant 0 : index
    %c0_48 = arith.constant 0 : index
    %69 = vector.load %arg8[%c0_47, %c0_48] : memref<120x84xf32, #tpu.memory_space<vmem>>, vector<120x84xf32>
    %cst_49 = arith.constant dense<0.000000e+00> : vector<8x84xf32>
    %70 = tpu.matmul %68, %69, %cst_49 {dimension_numbers = #tpu.dot_dimension_numbers<[1], [0], [0], [1], [0, 0, 1, 1], [], []>} : vector<8x120xf32>, vector<120x84xf32>, vector<8x84xf32> -> vector<8x84xf32>
    %c0_50 = arith.constant 0 : index
    %c0_51 = arith.constant 0 : index
    %71 = vector.load %arg9[%c0_50, %c0_51] : memref<1x84xf32, #tpu.memory_space<vmem>>, vector<1x84xf32>
    %72 = vector.broadcast %71 : vector<1x84xf32> to vector<8x84xf32>
    %73 = arith.addf %70, %72 : vector<8x84xf32>
    %cst_52 = arith.constant 0.000000e+00 : f32
    %74 = vector.broadcast %cst_52 : f32 to vector<8x84xf32>
    %75 = arith.maximumf %73, %74 : vector<8x84xf32>
    %c0_53 = arith.constant 0 : index
    %c0_54 = arith.constant 0 : index
    %76 = vector.load %arg10[%c0_53, %c0_54] : memref<84x128xf32, #tpu.memory_space<vmem>>, vector<84x128xf32>
    %cst_55 = arith.constant dense<0.000000e+00> : vector<8x128xf32>
    %77 = tpu.matmul %75, %76, %cst_55 {dimension_numbers = #tpu.dot_dimension_numbers<[1], [0], [0], [1], [0, 0, 1, 1], [], []>} : vector<8x84xf32>, vector<84x128xf32>, vector<8x128xf32> -> vector<8x128xf32>
    %c0_56 = arith.constant 0 : index
    %c0_57 = arith.constant 0 : index
    %78 = vector.load %arg11[%c0_56, %c0_57] : memref<1x128xf32, #tpu.memory_space<vmem>>, vector<1x128xf32>
    %79 = vector.broadcast %78 : vector<1x128xf32> to vector<8x128xf32>
    %80 = arith.addf %77, %79 : vector<8x128xf32>
    %c0_58 = arith.constant 0 : index
    %c0_59 = arith.constant 0 : index
    %81 = vector.load %arg12[%c0_58, %c0_59] : memref<8x128xf32, #tpu.memory_space<vmem>>, vector<8x128xf32>
    tpu.vector_store %arg12[%c0_58, %c0_59], %80 {strides = array<i32>} : memref<8x128xf32, #tpu.memory_space<vmem>>, vector<8x128xf32>,
    return
  }
  func.func @transform_0(%arg0: i32) -> (i32, i32, i32) {
    %c0_i32 = arith.constant 0 : i32
    %c0_i32_0 = arith.constant 0 : i32
    %c0_i32_1 = arith.constant 0 : i32
    return %c0_i32, %arg0, %c0_i32_0 : i32, i32, i32
  }
  func.func @transform_1(%arg0: i32) -> (i32, i32) {
    %c0_i32 = arith.constant 0 : i32
    %c0_i32_0 = arith.constant 0 : i32
    %c0_i32_1 = arith.constant 0 : i32
    return %c0_i32, %c0_i32_0 : i32, i32
  }
  func.func @transform_2(%arg0: i32) -> (i32, i32) {
    %c0_i32 = arith.constant 0 : i32
    %c0_i32_0 = arith.constant 0 : i32
    %c0_i32_1 = arith.constant 0 : i32
    return %c0_i32, %c0_i32_0 : i32, i32
  }
  func.func @transform_3(%arg0: i32) -> (i32, i32) {
    %c0_i32 = arith.constant 0 : i32
    %c0_i32_0 = arith.constant 0 : i32
    %c0_i32_1 = arith.constant 0 : i32
    return %c0_i32, %c0_i32_0 : i32, i32
  }
  func.func @transform_4(%arg0: i32) -> (i32, i32) {
    %c0_i32 = arith.constant 0 : i32
    %c0_i32_0 = arith.constant 0 : i32
    %c0_i32_1 = arith.constant 0 : i32
    return %c0_i32, %c0_i32_0 : i32, i32
  }
  func.func @transform_5(%arg0: i32) -> (i32, i32) {
    %c0_i32 = arith.constant 0 : i32
    %c0_i32_0 = arith.constant 0 : i32
    %c0_i32_1 = arith.constant 0 : i32
    return %c0_i32, %c0_i32_0 : i32, i32
  }
  func.func @transform_6(%arg0: i32) -> (i32, i32) {
    %c0_i32 = arith.constant 0 : i32
    %c0_i32_0 = arith.constant 0 : i32
    %c0_i32_1 = arith.constant 0 : i32
    return %c0_i32, %c0_i32_0 : i32, i32
  }
  func.func @transform_7(%arg0: i32) -> (i32, i32) {
    %c0_i32 = arith.constant 0 : i32
    %c0_i32_0 = arith.constant 0 : i32
    %c0_i32_1 = arith.constant 0 : i32
    return %c0_i32, %c0_i32_0 : i32, i32
  }
  func.func @transform_8(%arg0: i32) -> (i32, i32) {
    %c0_i32 = arith.constant 0 : i32
    %c0_i32_0 = arith.constant 0 : i32
    %c0_i32_1 = arith.constant 0 : i32
    return %c0_i32, %c0_i32_0 : i32, i32
  }
  func.func @transform_9(%arg0: i32) -> (i32, i32) {
    %c0_i32 = arith.constant 0 : i32
    %c0_i32_0 = arith.constant 0 : i32
    %c0_i32_1 = arith.constant 0 : i32
    return %c0_i32, %c0_i32_0 : i32, i32
  }
  func.func @transform_10(%arg0: i32) -> (i32, i32) {
    %c0_i32 = arith.constant 0 : i32
    %c0_i32_0 = arith.constant 0 : i32
    %c0_i32_1 = arith.constant 0 : i32
    return %c0_i32, %c0_i32_0 : i32, i32
  }
  func.func @transform_11(%arg0: i32) -> (i32, i32) {
    %c0_i32 = arith.constant 0 : i32
    %c0_i32_0 = arith.constant 0 : i32
    return %arg0, %c0_i32 : i32, i32
  }
}

</mosaic_0001>

<llo_original>
// kernel: charcnn_pallas.1
$region0: #{charcnn_pallas.1}
  #allocation0 [shape = 'u32[]', space=smem, size = 0x4, offset = 0x4, fixed_abs, tag = 'smem constant byte address 0x4 - core index']
  #allocation1 [shape = 'u32[144,128]{1,0:T(1,128)}', space=vmem, size = 0x12000, scoped, tag = 'internal scratch']
  #allocation2 [shape = 'f32[192,160]{1,0:T(8,128)}', space=vmem, size = 0x30000, scoped, tag = 'scratch operand']
  #allocation3 [shape = 'f32[64,720]{1,0:T(8,128)}', space=vmem, size = 0x30000, scoped, tag = 'scratch operand']
  #allocation4 [shape = 'f32[8,1024]{1,0:T(8,128)}', space=vmem, size = 0x8000, scoped, tag = 'scratch operand']
  %s0 = inlined_call_operand.vmem [shape: f32[28,8,32], index: 0, kind: input, shape index: {}]
  %s1 = inlined_call_operand.vmem [shape: f32[160,144], index: 1, kind: input, shape index: {}]
  %s2 = inlined_call_operand.vmem [shape: f32[1,144], index: 2, kind: input, shape index: {}]
  %s3 = inlined_call_operand.vmem [shape: f32[720,128], index: 3, kind: input, shape index: {}]
  %s4 = inlined_call_operand.vmem [shape: f32[1,128], index: 4, kind: input, shape index: {}]
  %s5 = inlined_call_operand.vmem [shape: f32[1024,120], index: 5, kind: input, shape index: {}]
  %s6 = inlined_call_operand.vmem [shape: f32[1,120], index: 6, kind: input, shape index: {}]
  %s7 = inlined_call_operand.vmem [shape: f32[120,84], index: 7, kind: input, shape index: {}]
  %s8 = inlined_call_operand.vmem [shape: f32[1,84], index: 8, kind: input, shape index: {}]
  %s9 = inlined_call_operand.vmem [shape: f32[84,128], index: 9, kind: input, shape index: {}]
  %s10 = inlined_call_operand.vmem [shape: f32[1,128], index: 10, kind: input, shape index: {}]
  %s11 = inlined_call_operand.vmem [shape: f32[8,128], index: 11, kind: output, shape index: {}]
  %s12 = sld [smem:[#allocation0]]
  $region54: #{charcnn_pallas.1} parent=0
    _
  %s14 = ssub.s32 1, %s12
  %s15 = scalar_select 0, %s14, %s12
  // Predicated region
  $region2: #{charcnn_pallas.1} parent=0 // pred_check
    _
  $region3: #{charcnn_pallas.1} parent=0 // pred_check_branch
    %17 = sbr.rel (0) target = $region5
  $region4: #{charcnn_pallas.1} parent=0 // pred_region
    _
  $region5: #{charcnn_pallas.1} parent=0 // pred_fallthru
    _
  // Predicated region
  $region6: #{charcnn_pallas.1} parent=0 // pred_check
    _
  $region7: #{charcnn_pallas.1} parent=0 // pred_check_branch
    %19 = sbr.rel (0) target = $region9
  $region8: #{charcnn_pallas.1} parent=0 // pred_region
    _
  $region9: #{charcnn_pallas.1} parent=0 // pred_fallthru
    _
  // Predicated region
  $region10: #{charcnn_pallas.1} parent=0 // pred_check
    _
  $region11: #{charcnn_pallas.1} parent=0 // pred_check_branch
    %21 = sbr.rel (0) target = $region13
  $region12: #{charcnn_pallas.1} parent=0 // pred_region
    _
  $region13: #{charcnn_pallas.1} parent=0 // pred_fallthru
    _
  // Predicated region
  $region14: #{charcnn_pallas.1} parent=0 // pred_check
    _
  $region15: #{charcnn_pallas.1} parent=0 // pred_check_branch
    %23 = sbr.rel (0) target = $region17
  $region16: #{charcnn_pallas.1} parent=0 // pred_region
    _
  $region17: #{charcnn_pallas.1} parent=0 // pred_fallthru
    _
  // Predicated region
  $region18: #{charcnn_pallas.1} parent=0 // pred_check
    _
  $region19: #{charcnn_pallas.1} parent=0 // pred_check_branch
    %25 = sbr.rel (0) target = $region21
  $region20: #{charcnn_pallas.1} parent=0 // pred_region
    _
  $region21: #{charcnn_pallas.1} parent=0 // pred_fallthru
    _
  // Predicated region
  $region22: #{charcnn_pallas.1} parent=0 // pred_check
    _
  $region23: #{charcnn_pallas.1} parent=0 // pred_check_branch
    %27 = sbr.rel (0) target = $region25
  $region24: #{charcnn_pallas.1} parent=0 // pred_region
    _
  $region25: #{charcnn_pallas.1} parent=0 // pred_fallthru
    _
  // Predicated region
  $region26: #{charcnn_pallas.1} parent=0 // pred_check
    _
  $region27: #{charcnn_pallas.1} parent=0 // pred_check_branch
    %29 = sbr.rel (0) target = $region29
  $region28: #{charcnn_pallas.1} parent=0 // pred_region
    _
  $region29: #{charcnn_pallas.1} parent=0 // pred_fallthru
    _
  // Predicated region
  $region30: #{charcnn_pallas.1} parent=0 // pred_check
    _
  $region31: #{charcnn_pallas.1} parent=0 // pred_check_branch
    %31 = sbr.rel (0) target = $region33
  $region32: #{charcnn_pallas.1} parent=0 // pred_region
    _
  $region33: #{charcnn_pallas.1} parent=0 // pred_fallthru
    _
  // Predicated region
  $region34: #{charcnn_pallas.1} parent=0 // pred_check
    _
  $region35: #{charcnn_pallas.1} parent=0 // pred_check_branch
    %33 = sbr.rel (0) target = $region37
  $region36: #{charcnn_pallas.1} parent=0 // pred_region
    _
  $region37: #{charcnn_pallas.1} parent=0 // pred_fallthru
    _
  // Predicated region
  $region38: #{charcnn_pallas.1} parent=0 // pred_check
    _
  $region39: #{charcnn_pallas.1} parent=0 // pred_check_branch
    %35 = sbr.rel (0) target = $region41
  $region40: #{charcnn_pallas.1} parent=0 // pred_region
    _
  $region41: #{charcnn_pallas.1} parent=0 // pred_fallthru
    _
  // Predicated region
  $region42: #{charcnn_pallas.1} parent=0 // pred_check
    _
  $region43: #{charcnn_pallas.1} parent=0 // pred_check_branch
    %37 = sbr.rel (0) target = $region45
  $region44: #{charcnn_pallas.1} parent=0 // pred_region
    _
  $region45: #{charcnn_pallas.1} parent=0 // pred_fallthru
    _
  %v38 = vld [vmem:[%s0] sm:$0xff]
  %v39 = vld [vmem:[%s0 + $0x8] sm:$0xff]
  %v40 = vld [vmem:[%s0 + $0x10] sm:$0xff]
  %v41 = vld [vmem:[%s0 + $0x18] sm:$0xff]
  %v42 = vld [vmem:[%s0 + $0x20] sm:$0xff]
  %v43 = vld [vmem:[%s0 + $0x28] sm:$0xff]
  %v44 = vld [vmem:[%s0 + $0x30] sm:$0xff]
  %v45 = vld [vmem:[%s0 + $0x38] sm:$0xff]
  %v46 = vld [vmem:[%s0 + $0x40] sm:$0xff]
  %v47 = vld [vmem:[%s0 + $0x48] sm:$0xff]
  %v48 = vld [vmem:[%s0 + $0x50] sm:$0xff]
  %v49 = vld [vmem:[%s0 + $0x58] sm:$0xff]
  %v50 = vld [vmem:[%s0 + $0x60] sm:$0xff]
  %v51 = vld [vmem:[%s0 + $0x68] sm:$0xff]
  %v52 = vld [vmem:[%s0 + $0x70] sm:$0xff]
  %v53 = vld [vmem:[%s0 + $0x78] sm:$0xff]
  %v54 = vld [vmem:[%s0 + $0x80] sm:$0xff]
  %v55 = vld [vmem:[%s0 + $0x88] sm:$0xff]
  %v56 = vld [vmem:[%s0 + $0x90] sm:$0xff]
  %v57 = vld [vmem:[%s0 + $0x98] sm:$0xff]
  %v58 = vld [vmem:[%s0 + $0xa0] sm:$0xff]
  %v59 = vld [vmem:[%s0 + $0xa8] sm:$0xff]
  %v60 = vld [vmem:[%s0 + $0xb0] sm:$0xff]
  %v61 = vld [vmem:[%s0 + $0xb8] sm:$0xff]
  %v62 = vld [vmem:[%s0 + $0xc0] sm:$0xff]
  %v63 = vld [vmem:[%s0 + $0xc8] sm:$0xff]
  %v64 = vld [vmem:[%s0 + $0xd0] sm:$0xff]
  %v65 = vld [vmem:[%s0 + $0xd8] sm:$0xff]
  %vm66 = vcmask 261120
  %67 = vst.msk [vmem:[#allocation2] sm:$0xff] %vm66, %v38
  %68 = vst.msk [vmem:[#allocation2 + $0x10] sm:$0xff] %vm66, %v39
  %69 = vst.msk [vmem:[#allocation2 + $0x20] sm:$0xff] %vm66, %v40
  %70 = vst.msk [vmem:[#allocation2 + $0x30] sm:$0xff] %vm66, %v41
  %71 = vst.msk [vmem:[#allocation2 + $0x40] sm:$0xff] %vm66, %v42
  %72 = vst.msk [vmem:[#allocation2 + $0x50] sm:$0xff] %vm66, %v43
  %73 = vst.msk [vmem:[#allocation2 + $0x60] sm:$0xff] %vm66, %v44
  %74 = vst.msk [vmem:[#allocation2 + $0x70] sm:$0xff] %vm66, %v45
  %75 = vst.msk [vmem:[#allocation2 + $0x80] sm:$0xff] %vm66, %v46
  %76 = vst.msk [vmem:[#allocation2 + $0x90] sm:$0xff] %vm66, %v47
  %77 = vst.msk [vmem:[#allocation2 + $0xa0] sm:$0xff] %vm66, %v48
  %78 = vst.msk [vmem:[#allocation2 + $0xb0] sm:$0xff] %vm66, %v49
  %79 = vst.msk [vmem:[#allocation2 + $0xc0] sm:$0xff] %vm66, %v50
  %80 = vst.msk [vmem:[#allocation2 + $0xd0] sm:$0xff] %vm66, %v51
  %81 = vst.msk [vmem:[#allocation2 + $0xe0] sm:$0xff] %vm66, %v52
  %82 = vst.msk [vmem:[#allocation2 + $0xf0] sm:$0xff] %vm66, %v53
  %83 = vst.msk [vmem:[#allocation2 + $0x100] sm:$0xff] %vm66, %v54
  %84 = vst.msk [vmem:[#allocation2 + $0x110] sm:$0xff] %vm66, %v55
  %85 = vst.msk [vmem:[#allocation2 + $0x120] sm:$0xff] %vm66, %v56
  %86 = vst.msk [vmem:[#allocation2 + $0x130] sm:$0xff] %vm66, %v57
  %87 = vst.msk [vmem:[#allocation2 + $0x140] sm:$0xff] %vm66, %v58
  %88 = vst.msk [vmem:[#allocation2 + $0x150] sm:$0xff] %vm66, %v59
  %89 = vst.msk [vmem:[#allocation2 + $0x160] sm:$0xff] %vm66, %v60
  %90 = vst.msk [vmem:[#allocation2 + $0x170] sm:$0xff] %vm66, %v61
  %115 = vrot.lane.b32.xlu0 %v39, 32
  %v116 = vpop.permute.xlu0 %115
  %117 = vrot.lane.b32.xlu0 %v40, 32
  %v118 = vpop.permute.xlu0 %117
  %119 = vrot.lane.b32.xlu0 %v41, 32
  %v120 = vpop.permute.xlu0 %119
  %121 = vrot.lane.b32.xlu0 %v42, 32
  %v122 = vpop.permute.xlu0 %121
  %123 = vrot.lane.b32.xlu0 %v43, 32
  %v124 = vpop.permute.xlu0 %123
  %125 = vrot.lane.b32.xlu0 %v44, 32
  %v126 = vpop.permute.xlu0 %125
  %127 = vrot.lane.b32.xlu0 %v45, 32
  %v128 = vpop.permute.xlu0 %127
  %129 = vrot.lane.b32.xlu0 %v46, 32
  %v130 = vpop.permute.xlu0 %129
  %131 = vrot.lane.b32.xlu0 %v47, 32
  %v132 = vpop.permute.xlu0 %131
  %133 = vrot.lane.b32.xlu0 %v48, 32
  %v134 = vpop.permute.xlu0 %133
  %135 = vrot.lane.b32.xlu0 %v49, 32
  %v136 = vpop.permute.xlu0 %135
  %137 = vrot.lane.b32.xlu0 %v50, 32
  %v138 = vpop.permute.xlu0 %137
  %139 = vrot.lane.b32.xlu0 %v51, 32
  %v140 = vpop.permute.xlu0 %139
  %141 = vrot.lane.b32.xlu0 %v52, 32
  %v142 = vpop.permute.xlu0 %141
  %143 = vrot.lane.b32.xlu0 %v53, 32
  %v144 = vpop.permute.xlu0 %143
  %145 = vrot.lane.b32.xlu0 %v54, 32
  %v146 = vpop.permute.xlu0 %145
  %147 = vrot.lane.b32.xlu0 %v55, 32
  %v148 = vpop.permute.xlu0 %147
  %149 = vrot.lane.b32.xlu0 %v56, 32
  %v150 = vpop.permute.xlu0 %149
  %151 = vrot.lane.b32.xlu0 %v57, 32
  %v152 = vpop.permute.xlu0 %151
  %153 = vrot.lane.b32.xlu0 %v58, 32
  %v154 = vpop.permute.xlu0 %153
  %155 = vrot.lane.b32.xlu0 %v59, 32
  %v156 = vpop.permute.xlu0 %155
  %157 = vrot.lane.b32.xlu0 %v60, 32
  %v158 = vpop.permute.xlu0 %157
  %159 = vrot.lane.b32.xlu0 %v61, 32
  %v160 = vpop.permute.xlu0 %159
  %161 = vrot.lane.b32.xlu0 %v62, 32
  %v162 = vpop.permute.xlu0 %161
  %vm187 = vcmask 523520
  %188 = vst.msk [vmem:[#allocation2] sm:$0xff] %vm187, %v116
  %189 = vst.msk [vmem:[#allocation2 + $0x10] sm:$0xff] %vm187, %v118
  %190 = vst.msk [vmem:[#allocation2 + $0x20] sm:$0xff] %vm187, %v120
  %191 = vst.msk [vmem:[#allocation2 + $0x30] sm:$0xff] %vm187, %v122
  %192 = vst.msk [vmem:[#allocation2 + $0x40] sm:$0xff] %vm187, %v124
  %193 = vst.msk [vmem:[#allocation2 + $0x50] sm:$0xff] %vm187, %v126
  %194 = vst.msk [vmem:[#allocation2 + $0x60] sm:$0xff] %vm187, %v128
  %195 = vst.msk [vmem:[#allocation2 + $0x70] sm:$0xff] %vm187, %v130
  %196 = vst.msk [vmem:[#allocation2 + $0x80] sm:$0xff] %vm187, %v132
  %197 = vst.msk [vmem:[#allocation2 + $0x90] sm:$0xff] %vm187, %v134
  %198 = vst.msk [vmem:[#allocation2 + $0xa0] sm:$0xff] %vm187, %v136
  %199 = vst.msk [vmem:[#allocation2 + $0xb0] sm:$0xff] %vm187, %v138
  %200 = vst.msk [vmem:[#allocation2 + $0xc0] sm:$0xff] %vm187, %v140
  %201 = vst.msk [vmem:[#allocation2 + $0xd0] sm:$0xff] %vm187, %v142
  %202 = vst.msk [vmem:[#allocation2 + $0xe0] sm:$0xff] %vm187, %v144
  %203 = vst.msk [vmem:[#allocation2 + $0xf0] sm:$0xff] %vm187, %v146
  %204 = vst.msk [vmem:[#allocation2 + $0x100] sm:$0xff] %vm187, %v148
  %205 = vst.msk [vmem:[#allocation2 + $0x110] sm:$0xff] %vm187, %v150
  %206 = vst.msk [vmem:[#allocation2 + $0x120] sm:$0xff] %vm187, %v152
  %207 = vst.msk [vmem:[#allocation2 + $0x130] sm:$0xff] %vm187, %v154
  %208 = vst.msk [vmem:[#allocation2 + $0x140] sm:$0xff] %vm187, %v156
  %209 = vst.msk [vmem:[#allocation2 + $0x150] sm:$0xff] %vm187, %v158
  %210 = vst.msk [vmem:[#allocation2 + $0x160] sm:$0xff] %vm187, %v160
  %211 = vst.msk [vmem:[#allocation2 + $0x170] sm:$0xff] %vm187, %v162
  %213 = vrot.lane.b32.xlu0 %v40, 64
  %v214 = vpop.permute.xlu0 %213
  %215 = vrot.lane.b32.xlu0 %v41, 64
  %v216 = vpop.permute.xlu0 %215
  %217 = vrot.lane.b32.xlu0 %v42, 64
  %v218 = vpop.permute.xlu0 %217
  %219 = vrot.lane.b32.xlu0 %v43, 64
  %v220 = vpop.permute.xlu0 %219
  %221 = vrot.lane.b32.xlu0 %v44, 64
  %v222 = vpop.permute.xlu0 %221
  %223 = vrot.lane.b32.xlu0 %v45, 64
  %v224 = vpop.permute.xlu0 %223
  %225 = vrot.lane.b32.xlu0 %v46, 64
  %v226 = vpop.permute.xlu0 %225
  %227 = vrot.lane.b32.xlu0 %v47, 64
  %v228 = vpop.permute.xlu0 %227
  %229 = vrot.lane.b32.xlu0 %v48, 64
  %v230 = vpop.permute.xlu0 %229
  %231 = vrot.lane.b32.xlu0 %v49, 64
  %v232 = vpop.permute.xlu0 %231
  %233 = vrot.lane.b32.xlu0 %v50, 64
  %v234 = vpop.permute.xlu0 %233
  %235 = vrot.lane.b32.xlu0 %v51, 64
  %v236 = vpop.permute.xlu0 %235
  %237 = vrot.lane.b32.xlu0 %v52, 64
  %v238 = vpop.permute.xlu0 %237
  %239 = vrot.lane.b32.xlu0 %v53, 64
  %v240 = vpop.permute.xlu0 %239
  %241 = vrot.lane.b32.xlu0 %v54, 64
  %v242 = vpop.permute.xlu0 %241
  %243 = vrot.lane.b32.xlu0 %v55, 64
  %v244 = vpop.permute.xlu0 %243
  %245 = vrot.lane.b32.xlu0 %v56, 64
  %v246 = vpop.permute.xlu0 %245
  %247 = vrot.lane.b32.xlu0 %v57, 64
  %v248 = vpop.permute.xlu0 %247
  %249 = vrot.lane.b32.xlu0 %v58, 64
  %v250 = vpop.permute.xlu0 %249
  %251 = vrot.lane.b32.xlu0 %v59, 64
  %v252 = vpop.permute.xlu0 %251
  %253 = vrot.lane.b32.xlu0 %v60, 64
  %v254 = vpop.permute.xlu0 %253
  %255 = vrot.lane.b32.xlu0 %v61, 64
  %v256 = vpop.permute.xlu0 %255
  %257 = vrot.lane.b32.xlu0 %v62, 64
  %v258 = vpop.permute.xlu0 %257
  %259 = vrot.lane.b32.xlu0 %v63, 64
  %v260 = vpop.permute.xlu0 %259
  %vm285 = vcmask 785920
  %286 = vst.msk [vmem:[#allocation2] sm:$0xff] %vm285, %v214
  %287 = vst.msk [vmem:[#allocation2 + $0x10] sm:$0xff] %vm285, %v216
  %288 = vst.msk [vmem:[#allocation2 + $0x20] sm:$0xff] %vm285, %v218
  %289 = vst.msk [vmem:[#allocation2 + $0x30] sm:$0xff] %vm285, %v220
  %290 = vst.msk [vmem:[#allocation2 + $0x40] sm:$0xff] %vm285, %v222
  %291 = vst.msk [vmem:[#allocation2 + $0x50] sm:$0xff] %vm285, %v224
  %292 = vst.msk [vmem:[#allocation2 + $0x60] sm:$0xff] %vm285, %v226
  %293 = vst.msk [vmem:[#allocation2 + $0x70] sm:$0xff] %vm285, %v228
  %294 = vst.msk [vmem:[#allocation2 + $0x80] sm:$0xff] %vm285, %v230
  %295 = vst.msk [vmem:[#allocation2 + $0x90] sm:$0xff] %vm285, %v232
  %296 = vst.msk [vmem:[#allocation2 + $0xa0] sm:$0xff] %vm285, %v234
  %297 = vst.msk [vmem:[#allocation2 + $0xb0] sm:$0xff] %vm285, %v236
  %298 = vst.msk [vmem:[#allocation2 + $0xc0] sm:$0xff] %vm285, %v238
  %299 = vst.msk [vmem:[#allocation2 + $0xd0] sm:$0xff] %vm285, %v240
  %300 = vst.msk [vmem:[#allocation2 + $0xe0] sm:$0xff] %vm285, %v242
  %301 = vst.msk [vmem:[#allocation2 + $0xf0] sm:$0xff] %vm285, %v244
  %302 = vst.msk [vmem:[#allocation2 + $0x100] sm:$0xff] %vm285, %v246
  %303 = vst.msk [vmem:[#allocation2 + $0x110] sm:$0xff] %vm285, %v248
  %304 = vst.msk [vmem:[#allocation2 + $0x120] sm:$0xff] %vm285, %v250
  %305 = vst.msk [vmem:[#allocation2 + $0x130] sm:$0xff] %vm285, %v252
  %306 = vst.msk [vmem:[#allocation2 + $0x140] sm:$0xff] %vm285, %v254
  %307 = vst.msk [vmem:[#allocation2 + $0x150] sm:$0xff] %vm285, %v256
  %308 = vst.msk [vmem:[#allocation2 + $0x160] sm:$0xff] %vm285, %v258
  %309 = vst.msk [vmem:[#allocation2 + $0x170] sm:$0xff] %vm285, %v260
  %311 = vrot.lane.b32.xlu0 %v41, 96
  %v312 = vpop.permute.xlu0 %311
  %313 = vrot.lane.b32.xlu0 %v42, 96
  %v314 = vpop.permute.xlu0 %313
  %315 = vrot.lane.b32.xlu0 %v43, 96
  %v316 = vpop.permute.xlu0 %315
  %317 = vrot.lane.b32.xlu0 %v44, 96
  %v318 = vpop.permute.xlu0 %317
  %319 = vrot.lane.b32.xlu0 %v45, 96
  %v320 = vpop.permute.xlu0 %319
  %321 = vrot.lane.b32.xlu0 %v46, 96
  %v322 = vpop.permute.xlu0 %321
  %323 = vrot.lane.b32.xlu0 %v47, 96
  %v324 = vpop.permute.xlu0 %323
  %325 = vrot.lane.b32.xlu0 %v48, 96
  %v326 = vpop.permute.xlu0 %325
  %327 = vrot.lane.b32.xlu0 %v49, 96
  %v328 = vpop.permute.xlu0 %327
  %329 = vrot.lane.b32.xlu0 %v50, 96
  %v330 = vpop.permute.xlu0 %329
  %331 = vrot.lane.b32.xlu0 %v51, 96
  %v332 = vpop.permute.xlu0 %331
  %333 = vrot.lane.b32.xlu0 %v52, 96
  %v334 = vpop.permute.xlu0 %333
  %335 = vrot.lane.b32.xlu0 %v53, 96
  %v336 = vpop.permute.xlu0 %335
  %337 = vrot.lane.b32.xlu0 %v54, 96
  %v338 = vpop.permute.xlu0 %337
  %339 = vrot.lane.b32.xlu0 %v55, 96
  %v340 = vpop.permute.xlu0 %339
  %341 = vrot.lane.b32.xlu0 %v56, 96
  %v342 = vpop.permute.xlu0 %341
  %343 = vrot.lane.b32.xlu0 %v57, 96
  %v344 = vpop.permute.xlu0 %343
  %345 = vrot.lane.b32.xlu0 %v58, 96
  %v346 = vpop.permute.xlu0 %345
  %347 = vrot.lane.b32.xlu0 %v59, 96
  %v348 = vpop.permute.xlu0 %347
  %349 = vrot.lane.b32.xlu0 %v60, 96
  %v350 = vpop.permute.xlu0 %349
  %351 = vrot.lane.b32.xlu0 %v61, 96
  %v352 = vpop.permute.xlu0 %351
  %353 = vrot.lane.b32.xlu0 %v62, 96
  %v354 = vpop.permute.xlu0 %353
  %355 = vrot.lane.b32.xlu0 %v63, 96
  %v356 = vpop.permute.xlu0 %355
  %357 = vrot.lane.b32.xlu0 %v64, 96
  %v358 = vpop.permute.xlu0 %357
  %vm383 = vcmask 1048320
  %384 = vst.msk [vmem:[#allocation2] sm:$0xff] %vm383, %v312
  %385 = vst.msk [vmem:[#allocation2 + $0x10] sm:$0xff] %vm383, %v314
  %386 = vst.msk [vmem:[#allocation2 + $0x20] sm:$0xff] %vm383, %v316
  %387 = vst.msk [vmem:[#allocation2 + $0x30] sm:$0xff] %vm383, %v318
  %388 = vst.msk [vmem:[#allocation2 + $0x40] sm:$0xff] %vm383, %v320
  %389 = vst.msk [vmem:[#allocation2 + $0x50] sm:$0xff] %vm383, %v322
  %390 = vst.msk [vmem:[#allocation2 + $0x60] sm:$0xff] %vm383, %v324
  %391 = vst.msk [vmem:[#allocation2 + $0x70] sm:$0xff] %vm383, %v326
  %392 = vst.msk [vmem:[#allocation2 + $0x80] sm:$0xff] %vm383, %v328
  %393 = vst.msk [vmem:[#allocation2 + $0x90] sm:$0xff] %vm383, %v330
  %394 = vst.msk [vmem:[#allocation2 + $0xa0] sm:$0xff] %vm383, %v332
  %395 = vst.msk [vmem:[#allocation2 + $0xb0] sm:$0xff] %vm383, %v334
  %396 = vst.msk [vmem:[#allocation2 + $0xc0] sm:$0xff] %vm383, %v336
  %397 = vst.msk [vmem:[#allocation2 + $0xd0] sm:$0xff] %vm383, %v338
  %398 = vst.msk [vmem:[#allocation2 + $0xe0] sm:$0xff] %vm383, %v340
  %399 = vst.msk [vmem:[#allocation2 + $0xf0] sm:$0xff] %vm383, %v342
  %400 = vst.msk [vmem:[#allocation2 + $0x100] sm:$0xff] %vm383, %v344
  %401 = vst.msk [vmem:[#allocation2 + $0x110] sm:$0xff] %vm383, %v346
  %402 = vst.msk [vmem:[#allocation2 + $0x120] sm:$0xff] %vm383, %v348
  %403 = vst.msk [vmem:[#allocation2 + $0x130] sm:$0xff] %vm383, %v350
  %404 = vst.msk [vmem:[#allocation2 + $0x140] sm:$0xff] %vm383, %v352
  %405 = vst.msk [vmem:[#allocation2 + $0x150] sm:$0xff] %vm383, %v354
  %406 = vst.msk [vmem:[#allocation2 + $0x160] sm:$0xff] %vm383, %v356
  %407 = vst.msk [vmem:[#allocation2 + $0x170] sm:$0xff] %vm383, %v358
  %408 = vst.msk [vmem:[#allocation2 + $0x8] sm:$0xff] %vm66, %v42
  %409 = vst.msk [vmem:[#allocation2 + $0x18] sm:$0xff] %vm66, %v43
  %410 = vst.msk [vmem:[#allocation2 + $0x28] sm:$0xff] %vm66, %v44
  %411 = vst.msk [vmem:[#allocation2 + $0x38] sm:$0xff] %vm66, %v45
  %412 = vst.msk [vmem:[#allocation2 + $0x48] sm:$0xff] %vm66, %v46
  %413 = vst.msk [vmem:[#allocation2 + $0x58] sm:$0xff] %vm66, %v47
  %414 = vst.msk [vmem:[#allocation2 + $0x68] sm:$0xff] %vm66, %v48
  %415 = vst.msk [vmem:[#allocation2 + $0x78] sm:$0xff] %vm66, %v49
  %416 = vst.msk [vmem:[#allocation2 + $0x88] sm:$0xff] %vm66, %v50
  %417 = vst.msk [vmem:[#allocation2 + $0x98] sm:$0xff] %vm66, %v51
  %418 = vst.msk [vmem:[#allocation2 + $0xa8] sm:$0xff] %vm66, %v52
  %419 = vst.msk [vmem:[#allocation2 + $0xb8] sm:$0xff] %vm66, %v53
  %420 = vst.msk [vmem:[#allocation2 + $0xc8] sm:$0xff] %vm66, %v54
  %421 = vst.msk [vmem:[#allocation2 + $0xd8] sm:$0xff] %vm66, %v55
  %422 = vst.msk [vmem:[#allocation2 + $0xe8] sm:$0xff] %vm66, %v56
  %423 = vst.msk [vmem:[#allocation2 + $0xf8] sm:$0xff] %vm66, %v57
  %424 = vst.msk [vmem:[#allocation2 + $0x108] sm:$0xff] %vm66, %v58
  %425 = vst.msk [vmem:[#allocation2 + $0x118] sm:$0xff] %vm66, %v59
  %426 = vst.msk [vmem:[#allocation2 + $0x128] sm:$0xff] %vm66, %v60
  %427 = vst.msk [vmem:[#allocation2 + $0x138] sm:$0xff] %vm66, %v61
  %428 = vst.msk [vmem:[#allocation2 + $0x148] sm:$0xff] %vm66, %v62
  %429 = vst.msk [vmem:[#allocation2 + $0x158] sm:$0xff] %vm66, %v63
  %430 = vst.msk [vmem:[#allocation2 + $0x168] sm:$0xff] %vm66, %v64
  %431 = vst.msk [vmem:[#allocation2 + $0x178] sm:$0xff] %vm66, %v65
  %v432 = vld [vmem:[#allocation2] sm:$0xff]
  %v433 = vld [vmem:[#allocation2 + $0x8] sm:$0xff]
  %v434 = vld [vmem:[#allocation2 + $0x10] sm:$0xff]
  %v435 = vld [vmem:[#allocation2 + $0x18] sm:$0xff]
  %v436 = vld [vmem:[#allocation2 + $0x20] sm:$0xff]
  %v437 = vld [vmem:[#allocation2 + $0x28] sm:$0xff]
  %v438 = vld [vmem:[#allocation2 + $0x30] sm:$0xff]
  %v439 = vld [vmem:[#allocation2 + $0x38] sm:$0xff]
  %v440 = vld [vmem:[#allocation2 + $0x40] sm:$0xff]
  %v441 = vld [vmem:[#allocation2 + $0x48] sm:$0xff]
  %v442 = vld [vmem:[#allocation2 + $0x50] sm:$0xff]
  %v443 = vld [vmem:[#allocation2 + $0x58] sm:$0xff]
  %v444 = vld [vmem:[#allocation2 + $0x60] sm:$0xff]
  %v445 = vld [vmem:[#allocation2 + $0x68] sm:$0xff]
  %v446 = vld [vmem:[#allocation2 + $0x70] sm:$0xff]
  %v447 = vld [vmem:[#allocation2 + $0x78] sm:$0xff]
  %v448 = vld [vmem:[#allocation2 + $0x80] sm:$0xff]
  %v449 = vld [vmem:[#allocation2 + $0x88] sm:$0xff]
  %v450 = vld [vmem:[#allocation2 + $0x90] sm:$0xff]
  %v451 = vld [vmem:[#allocation2 + $0x98] sm:$0xff]
  %v452 = vld [vmem:[#allocation2 + $0xa0] sm:$0xff]
  %v453 = vld [vmem:[#allocation2 + $0xa8] sm:$0xff]
  %v454 = vld [vmem:[#allocation2 + $0xb0] sm:$0xff]
  %v455 = vld [vmem:[#allocation2 + $0xb8] sm:$0xff]
  %v456 = vld [vmem:[#allocation2 + $0xc0] sm:$0xff]
  %v457 = vld [vmem:[#allocation2 + $0xc8] sm:$0xff]
  %v458 = vld [vmem:[#allocation2 + $0xd0] sm:$0xff]
  %v459 = vld [vmem:[#allocation2 + $0xd8] sm:$0xff]
  %v460 = vld [vmem:[#allocation2 + $0xe0] sm:$0xff]
  %v461 = vld [vmem:[#allocation2 + $0xe8] sm:$0xff]
  %v462 = vld [vmem:[#allocation2 + $0xf0] sm:$0xff]
  %v463 = vld [vmem:[#allocation2 + $0xf8] sm:$0xff]
  %v464 = vld [vmem:[#allocation2 + $0x100] sm:$0xff]
  %v465 = vld [vmem:[#allocation2 + $0x108] sm:$0xff]
  %v466 = vld [vmem:[#allocation2 + $0x110] sm:$0xff]
  %v467 = vld [vmem:[#allocation2 + $0x118] sm:$0xff]
  %v468 = vld [vmem:[#allocation2 + $0x120] sm:$0xff]
  %v469 = vld [vmem:[#allocation2 + $0x128] sm:$0xff]
  %v470 = vld [vmem:[#allocation2 + $0x130] sm:$0xff]
  %v471 = vld [vmem:[#allocation2 + $0x138] sm:$0xff]
  %v472 = vld [vmem:[#allocation2 + $0x140] sm:$0xff]
  %v473 = vld [vmem:[#allocation2 + $0x148] sm:$0xff]
  %v474 = vld [vmem:[#allocation2 + $0x150] sm:$0xff]
  %v475 = vld [vmem:[#allocation2 + $0x158] sm:$0xff]
  %v476 = vld [vmem:[#allocation2 + $0x160] sm:$0xff]
  %v477 = vld [vmem:[#allocation2 + $0x168] sm:$0xff]
  %v478 = vld [vmem:[#allocation2 + $0x170] sm:$0xff]
  %v479 = vld [vmem:[#allocation2 + $0x178] sm:$0xff]
  %v480 = vld [vmem:[%s1] sm:$0xff]
  %v481 = vld [vmem:[%s1 + $0x8] sm:$0xff]
  %v482 = vld [vmem:[%s1 + $0x10] sm:$0xff]
  %v483 = vld [vmem:[%s1 + $0x18] sm:$0xff]
  %v484 = vld [vmem:[%s1 + $0x20] sm:$0xff]
  %v485 = vld [vmem:[%s1 + $0x28] sm:$0xff]
  %v486 = vld [vmem:[%s1 + $0x30] sm:$0xff]
  %v487 = vld [vmem:[%s1 + $0x38] sm:$0xff]
  %v488 = vld [vmem:[%s1 + $0x40] sm:$0xff]
  %v489 = vld [vmem:[%s1 + $0x48] sm:$0xff]
  %v490 = vld [vmem:[%s1 + $0x50] sm:$0xff]
  %v491 = vld [vmem:[%s1 + $0x58] sm:$0xff]
  %v492 = vld [vmem:[%s1 + $0x60] sm:$0xff]
  %v493 = vld [vmem:[%s1 + $0x68] sm:$0xff]
  %v494 = vld [vmem:[%s1 + $0x70] sm:$0xff]
  %v495 = vld [vmem:[%s1 + $0x78] sm:$0xff]
  %v496 = vld [vmem:[%s1 + $0x80] sm:$0xff]
  %v497 = vld [vmem:[%s1 + $0x88] sm:$0xff]
  %v498 = vld [vmem:[%s1 + $0x90] sm:$0xff]
  %v499 = vld [vmem:[%s1 + $0x98] sm:$0xff]
  %v500 = vld [vmem:[%s1 + $0xa0] sm:$0xff]
  %v501 = vld [vmem:[%s1 + $0xa8] sm:$0xff]
  %v502 = vld [vmem:[%s1 + $0xb0] sm:$0xff]
  %v503 = vld [vmem:[%s1 + $0xb8] sm:$0xff]
  %v504 = vld [vmem:[%s1 + $0xc0] sm:$0xff]
  %v505 = vld [vmem:[%s1 + $0xc8] sm:$0xff]
  %v506 = vld [vmem:[%s1 + $0xd0] sm:$0xff]
  %v507 = vld [vmem:[%s1 + $0xd8] sm:$0xff]
  %v508 = vld [vmem:[%s1 + $0xe0] sm:$0xff]
  %v509 = vld [vmem:[%s1 + $0xe8] sm:$0xff]
  %v510 = vld [vmem:[%s1 + $0xf0] sm:$0xff]
  %v511 = vld [vmem:[%s1 + $0xf8] sm:$0xff]
  %v512 = vld [vmem:[%s1 + $0x100] sm:$0xff]
  %v513 = vld [vmem:[%s1 + $0x108] sm:$0xff]
  %v514 = vld [vmem:[%s1 + $0x110] sm:$0xff]
  %v515 = vld [vmem:[%s1 + $0x118] sm:$0xff]
  %v516 = vld [vmem:[%s1 + $0x120] sm:$0xff]
  %v517 = vld [vmem:[%s1 + $0x128] sm:$0xff]
  %v518 = vld [vmem:[%s1 + $0x130] sm:$0xff]
  %v519 = vld [vmem:[%s1 + $0x138] sm:$0xff]
  %v520 = vld [vmem:[%s2] sm:$0x3]
  %v522 = vlaneseq
  %v523 = vshrl.u32 %v522, 7
  %v524 = vsub.s32 0, %v523
  %v525 = vrot.slane %v520, %v524
  %v526 = vlaneseq
  %v527 = vshrl.u32 %v526, 7
  %v528 = vsub.s32 1, %v527
  %v529 = vrot.slane %v520, %v528
  %v533 = vsel %vm66, %v433, 0
  %v536 = vsel %vm66, %v435, 0
  %v539 = vsel %vm66, %v437, 0
  %v542 = vsel %vm66, %v439, 0
  %v545 = vsel %vm66, %v441, 0
  %v548 = vsel %vm66, %v443, 0
  %v551 = vsel %vm66, %v445, 0
  %v554 = vsel %vm66, %v447, 0
  %v557 = vsel %vm66, %v449, 0
  %v560 = vsel %vm66, %v451, 0
  %v563 = vsel %vm66, %v453, 0
  %v566 = vsel %vm66, %v455, 0
  %v569 = vsel %vm66, %v457, 0
  %v572 = vsel %vm66, %v459, 0
  %v575 = vsel %vm66, %v461, 0
  %v578 = vsel %vm66, %v463, 0
  %v581 = vsel %vm66, %v465, 0
  %v584 = vsel %vm66, %v467, 0
  %v587 = vsel %vm66, %v469, 0
  %v590 = vsel %vm66, %v471, 0
  %v593 = vsel %vm66, %v473, 0
  %v596 = vsel %vm66, %v475, 0
  %v599 = vsel %vm66, %v477, 0
  %v602 = vsel %vm66, %v479, 0
  %604 = vmatprep.subr.mxu0 %v481
  %605 = vmatpush1.msra.mxu0 %v480
  %606 = vmatprep.subr.mxu0 %v483
  %607 = vmatpush1.msra.mxu0 %v482
  %608 = vmatprep.subr.mxu0 %v485
  %609 = vmatpush1.msra.mxu0 %v484
  %610 = vmatprep.subr.mxu0 %v487
  %611 = vmatpush1.msra.mxu0 %v486
  %612 = vmatprep.subr.mxu0 %v489
  %613 = vmatpush1.msra.mxu0 %v488
  %614 = vmatprep.subr.mxu0 %v491
  %615 = vmatpush1.msra.mxu0 %v490
  %616 = vmatprep.subr.mxu0 %v493
  %617 = vmatpush1.msra.mxu0 %v492
  %618 = vmatprep.subr.mxu0 %v495
  %619 = vmatpush1.msra.mxu0 %v494
  %620 = vmatprep.subr.mxu0 %v497
  %621 = vmatpush1.msra.mxu0 %v496
  %622 = vmatprep.subr.mxu0 %v499
  %623 = vmatpush1.msra.mxu0 %v498
  %624 = vmatprep.subr.mxu0 %v501
  %625 = vmatpush1.msra.mxu0 %v500
  %626 = vmatprep.subr.mxu0 %v503
  %627 = vmatpush1.msra.mxu0 %v502
  %628 = vmatprep.subr.mxu0 %v505
  %629 = vmatpush1.msra.mxu0 %v504
  %630 = vmatprep.subr.mxu0 %v507
  %631 = vmatpush1.msra.mxu0 %v506
  %632 = vmatprep.subr.mxu0 %v509
  %633 = vmatpush1.msra.mxu0 %v508
  %634 = vmatprep.subr.mxu0 %v511
  %635 = vmatpush1.msra.mxu0 %v510
  %636 = vmatprep.subr.mxu0 %v513
  %637 = vmatpush1.msra.mxu0 %v512
  %638 = vmatprep.subr.mxu0 %v515
  %639 = vmatpush1.msra.mxu0 %v514
  %640 = vmatprep.subr.mxu0 %v517
  %641 = vmatpush1.msra.mxu0 %v516
  %642 = vmatprep.subr.mxu0 %v519
  %643 = vmatpush1.msra.mxu0 %v518
  %644 = vmatprep.subr.mxu0 0.0
  %645 = vmatpush1.msra.mxu0 0.0
  %646 = vmatprep.subr.mxu0 0.0
  %647 = vmatpush1.msra.mxu0 0.0
  %648 = vmatprep.subr.mxu0 0.0
  %649 = vmatpush1.msra.mxu0 0.0
  %650 = vmatprep.subr.mxu0 0.0
  %651 = vmatpush1.msra.mxu0 0.0
  %652 = vmatprep.subr.mxu0 0.0
  %653 = vmatpush1.msra.mxu0 0.0
  %654 = vmatprep.subr.mxu0 0.0
  %655 = vmatpush1.msra.mxu0 0.0
  %656 = vmatprep.subr.mxu0 0.0
  %657 = vmatpush1.msra.mxu0 0.0
  %658 = vmatprep.subr.mxu0 0.0
  %659 = vmatpush1.msra.mxu0 0.0
  %660 = vmatprep.subr.mxu0 0.0
  %661 = vmatpush1.msra.mxu0 0.0
  %662 = vmatprep.subr.mxu0 0.0
  %663 = vmatpush1.msra.mxu0 0.0
  %664 = vmatprep.subr.mxu0 0.0
  %665 = vmatpush1.msra.mxu0 0.0
  %666 = vmatprep.subr.mxu0 0.0
  %667 = vmatpush1.msra.mxu0 0.0
  %668 = vmatprep.mubr.f32.mxu0 %v533
  %669 = vmatmul.mubr.f32.gmra.mrb[0].mxu0 %v432
  %v670 = vpop.f32.mrb[0].mxu0
  %v671 = vadd.f32 %v525, %v670
  %v672 = vpop.f32.mrb[0].mxu0
  %v673 = vadd.f32 %v529, %v672
  %674 = vmatprep.mubr.f32.mxu0 %v536
  %675 = vmatmul.mubr.f32.gmra.mrb[0].mxu0 %v434
  %v676 = vpop.f32.mrb[0].mxu0
  %v677 = vadd.f32 %v525, %v676
  %v678 = vpop.f32.mrb[0].mxu0
  %v679 = vadd.f32 %v529, %v678
  %680 = vmatprep.mubr.f32.mxu0 %v539
  %681 = vmatmul.mubr.f32.gmra.mrb[0].mxu0 %v436
  %v682 = vpop.f32.mrb[0].mxu0
  %v683 = vadd.f32 %v525, %v682
  %v684 = vpop.f32.mrb[0].mxu0
  %v685 = vadd.f32 %v529, %v684
  %686 = vmatprep.mubr.f32.mxu0 %v542
  %687 = vmatmul.mubr.f32.gmra.mrb[0].mxu0 %v438
  %v688 = vpop.f32.mrb[0].mxu0
  %v689 = vadd.f32 %v525, %v688
  %v690 = vpop.f32.mrb[0].mxu0
  %v691 = vadd.f32 %v529, %v690
  %692 = vmatprep.mubr.f32.mxu0 %v545
  %693 = vmatmul.mubr.f32.gmra.mrb[0].mxu0 %v440
  %v694 = vpop.f32.mrb[0].mxu0
  %v695 = vadd.f32 %v525, %v694
  %v696 = vpop.f32.mrb[0].mxu0
  %v697 = vadd.f32 %v529, %v696
  %698 = vmatprep.mubr.f32.mxu0 %v548
  %699 = vmatmul.mubr.f32.gmra.mrb[0].mxu0 %v442
  %v700 = vpop.f32.mrb[0].mxu0
  %v701 = vadd.f32 %v525, %v700
  %v702 = vpop.f32.mrb[0].mxu0
  %v703 = vadd.f32 %v529, %v702
  %704 = vmatprep.mubr.f32.mxu0 %v551
  %705 = vmatmul.mubr.f32.gmra.mrb[0].mxu0 %v444
  %v706 = vpop.f32.mrb[0].mxu0
  %v707 = vadd.f32 %v525, %v706
  %v708 = vpop.f32.mrb[0].mxu0
  %v709 = vadd.f32 %v529, %v708
  %710 = vmatprep.mubr.f32.mxu0 %v554
  %711 = vmatmul.mubr.f32.gmra.mrb[0].mxu0 %v446
  %v712 = vpop.f32.mrb[0].mxu0
  %v713 = vadd.f32 %v525, %v712
  %v714 = vpop.f32.mrb[0].mxu0
  %v715 = vadd.f32 %v529, %v714
  %716 = vmatprep.mubr.f32.mxu0 %v557
  %717 = vmatmul.mubr.f32.gmra.mrb[0].mxu0 %v448
  %v718 = vpop.f32.mrb[0].mxu0
  %v719 = vadd.f32 %v525, %v718
  %v720 = vpop.f32.mrb[0].mxu0
  %v721 = vadd.f32 %v529, %v720
  %722 = vmatprep.mubr.f32.mxu0 %v560
  %723 = vmatmul.mubr.f32.gmra.mrb[0].mxu0 %v450
  %v724 = vpop.f32.mrb[0].mxu0
  %v725 = vadd.f32 %v525, %v724
  %v726 = vpop.f32.mrb[0].mxu0
  %v727 = vadd.f32 %v529, %v726
  %728 = vmatprep.mubr.f32.mxu0 %v563
  %729 = vmatmul.mubr.f32.gmra.mrb[0].mxu0 %v452
  %v730 = vpop.f32.mrb[0].mxu0
  %v731 = vadd.f32 %v525, %v730
  %v732 = vpop.f32.mrb[0].mxu0
  %v733 = vadd.f32 %v529, %v732
  %734 = vmatprep.mubr.f32.mxu0 %v566
  %735 = vmatmul.mubr.f32.gmra.mrb[0].mxu0 %v454
  %v736 = vpop.f32.mrb[0].mxu0
  %v737 = vadd.f32 %v525, %v736
  %v738 = vpop.f32.mrb[0].mxu0
  %v739 = vadd.f32 %v529, %v738
  %740 = vmatprep.mubr.f32.mxu0 %v569
  %741 = vmatmul.mubr.f32.gmra.mrb[0].mxu0 %v456
  %v742 = vpop.f32.mrb[0].mxu0
  %v743 = vadd.f32 %v525, %v742
  %v744 = vpop.f32.mrb[0].mxu0
  %v745 = vadd.f32 %v529, %v744
  %746 = vmatprep.mubr.f32.mxu0 %v572
  %747 = vmatmul.mubr.f32.gmra.mrb[0].mxu0 %v458
  %v748 = vpop.f32.mrb[0].mxu0
  %v749 = vadd.f32 %v525, %v748
  %v750 = vpop.f32.mrb[0].mxu0
  %v751 = vadd.f32 %v529, %v750
  %752 = vmatprep.mubr.f32.mxu0 %v575
  %753 = vmatmul.mubr.f32.gmra.mrb[0].mxu0 %v460
  %v754 = vpop.f32.mrb[0].mxu0
  %v755 = vadd.f32 %v525, %v754
  %v756 = vpop.f32.mrb[0].mxu0
  %v757 = vadd.f32 %v529, %v756
  %758 = vmatprep.mubr.f32.mxu0 %v578
  %759 = vmatmul.mubr.f32.gmra.mrb[0].mxu0 %v462
  %v760 = vpop.f32.mrb[0].mxu0
  %v761 = vadd.f32 %v525, %v760
  %v762 = vpop.f32.mrb[0].mxu0
  %v763 = vadd.f32 %v529, %v762
  %764 = vmatprep.mubr.f32.mxu0 %v581
  %765 = vmatmul.mubr.f32.gmra.mrb[0].mxu0 %v464
  %v766 = vpop.f32.mrb[0].mxu0
  %v767 = vadd.f32 %v525, %v766
  %v768 = vpop.f32.mrb[0].mxu0
  %v769 = vadd.f32 %v529, %v768
  %770 = vmatprep.mubr.f32.mxu0 %v584
  %771 = vmatmul.mubr.f32.gmra.mrb[0].mxu0 %v466
  %v772 = vpop.f32.mrb[0].mxu0
  %v773 = vadd.f32 %v525, %v772
  %v774 = vpop.f32.mrb[0].mxu0
  %v775 = vadd.f32 %v529, %v774
  %776 = vmatprep.mubr.f32.mxu0 %v587
  %777 = vmatmul.mubr.f32.gmra.mrb[0].mxu0 %v468
  %v778 = vpop.f32.mrb[0].mxu0
  %v779 = vadd.f32 %v525, %v778
  %v780 = vpop.f32.mrb[0].mxu0
  %v781 = vadd.f32 %v529, %v780
  %782 = vmatprep.mubr.f32.mxu0 %v590
  %783 = vmatmul.mubr.f32.gmra.mrb[0].mxu0 %v470
  %v784 = vpop.f32.mrb[0].mxu0
  %v785 = vadd.f32 %v525, %v784
  %v786 = vpop.f32.mrb[0].mxu0
  %v787 = vadd.f32 %v529, %v786
  %788 = vmatprep.mubr.f32.mxu0 %v593
  %789 = vmatmul.mubr.f32.gmra.mrb[0].mxu0 %v472
  %v790 = vpop.f32.mrb[0].mxu0
  %v791 = vadd.f32 %v525, %v790
  %v792 = vpop.f32.mrb[0].mxu0
  %v793 = vadd.f32 %v529, %v792
  %794 = vmatprep.mubr.f32.mxu0 %v596
  %795 = vmatmul.mubr.f32.gmra.mrb[0].mxu0 %v474
  %v796 = vpop.f32.mrb[0].mxu0
  %v797 = vadd.f32 %v525, %v796
  %v798 = vpop.f32.mrb[0].mxu0
  %v799 = vadd.f32 %v529, %v798
  %800 = vmatprep.mubr.f32.mxu0 %v599
  %801 = vmatmul.mubr.f32.gmra.mrb[0].mxu0 %v476
  %v802 = vpop.f32.mrb[0].mxu0
  %v803 = vadd.f32 %v525, %v802
  %v804 = vpop.f32.mrb[0].mxu0
  %v805 = vadd.f32 %v529, %v804
  %806 = vmatprep.mubr.f32.mxu0 %v602
  %807 = vmatmul.mubr.f32.gmra.mrb[0].mxu0 %v478
  %v808 = vpop.f32.mrb[0].mxu0
  %v809 = vadd.f32 %v525, %v808
  %v810 = vpop.f32.mrb[0].mxu0
  %v811 = vadd.f32 %v529, %v810
  %812 = vdwg.mxu0
  %v813 = vmax.f32 %v671, 0.0
  %v814 = vmax.f32 %v673, 0.0
  %v815 = vmax.f32 %v677, 0.0
  %v816 = vmax.f32 %v679, 0.0
  %v817 = vmax.f32 %v683, 0.0
  %v818 = vmax.f32 %v685, 0.0
  %v819 = vmax.f32 %v689, 0.0
  %v820 = vmax.f32 %v691, 0.0
  %v821 = vmax.f32 %v695, 0.0
  %v822 = vmax.f32 %v697, 0.0
  %v823 = vmax.f32 %v701, 0.0
  %v824 = vmax.f32 %v703, 0.0
  %v825 = vmax.f32 %v707, 0.0
  %v826 = vmax.f32 %v709, 0.0
  %v827 = vmax.f32 %v713, 0.0
  %v828 = vmax.f32 %v715, 0.0
  %v829 = vmax.f32 %v719, 0.0
  %v830 = vmax.f32 %v721, 0.0
  %v831 = vmax.f32 %v725, 0.0
  %v832 = vmax.f32 %v727, 0.0
  %v833 = vmax.f32 %v731, 0.0
  %v834 = vmax.f32 %v733, 0.0
  %v835 = vmax.f32 %v737, 0.0
  %v836 = vmax.f32 %v739, 0.0
  %v837 = vmax.f32 %v743, 0.0
  %v838 = vmax.f32 %v745, 0.0
  %v839 = vmax.f32 %v749, 0.0
  %v840 = vmax.f32 %v751, 0.0
  %v841 = vmax.f32 %v755, 0.0
  %v842 = vmax.f32 %v757, 0.0
  %v843 = vmax.f32 %v761, 0.0
  %v844 = vmax.f32 %v763, 0.0
  %v845 = vmax.f32 %v767, 0.0
  %v846 = vmax.f32 %v769, 0.0
  %v847 = vmax.f32 %v773, 0.0
  %v848 = vmax.f32 %v775, 0.0
  %v849 = vmax.f32 %v779, 0.0
  %v850 = vmax.f32 %v781, 0.0
  %v851 = vmax.f32 %v785, 0.0
  %v852 = vmax.f32 %v787, 0.0
  %v853 = vmax.f32 %v791, 0.0
  %v854 = vmax.f32 %v793, 0.0
  %v855 = vmax.f32 %v797, 0.0
  %v856 = vmax.f32 %v799, 0.0
  %v857 = vmax.f32 %v803, 0.0
  %v858 = vmax.f32 %v805, 0.0
  %v859 = vmax.f32 %v809, 0.0
  %v860 = vmax.f32 %v811, 0.0
  %v861 = vadd.f32 %v813, %v815
  %v862 = vadd.f32 %v814, %v816
  %v863 = vadd.f32 %v817, %v819
  %v864 = vadd.f32 %v818, %v820
  %v865 = vadd.f32 %v821, %v823
  %v866 = vadd.f32 %v822, %v824
  %v867 = vadd.f32 %v825, %v827
  %v868 = vadd.f32 %v826, %v828
  %v869 = vadd.f32 %v829, %v831
  %v870 = vadd.f32 %v830, %v832
  %v871 = vadd.f32 %v833, %v835
  %v872 = vadd.f32 %v834, %v836
  %v873 = vadd.f32 %v837, %v839
  %v874 = vadd.f32 %v838, %v840
  %v875 = vadd.f32 %v841, %v843
  %v876 = vadd.f32 %v842, %v844
  %v877 = vadd.f32 %v845, %v847
  %v878 = vadd.f32 %v846, %v848
  %v879 = vadd.f32 %v849, %v851
  %v880 = vadd.f32 %v850, %v852
  %v881 = vadd.f32 %v853, %v855
  %v882 = vadd.f32 %v854, %v856
  %v883 = vadd.f32 %v857, %v859
  %v884 = vadd.f32 %v858, %v860
  %885 = vst [vmem:[#allocation3] sm:$0xff] %v861
  %vm886 = vcmask 130048
  %887 = vst.msk [vmem:[#allocation3 + $0x8] sm:$0xff] %vm886, %v862
  %888 = vst [vmem:[#allocation3 + $0x30] sm:$0xff] %v863
  %889 = vst.msk [vmem:[#allocation3 + $0x38] sm:$0xff] %vm886, %v864
  %890 = vst [vmem:[#allocation3 + $0x60] sm:$0xff] %v865
  %891 = vst.msk [vmem:[#allocation3 + $0x68] sm:$0xff] %vm886, %v866
  %892 = vst [vmem:[#allocation3 + $0x90] sm:$0xff] %v867
  %893 = vst.msk [vmem:[#allocation3 + $0x98] sm:$0xff] %vm886, %v868
  %894 = vst [vmem:[#allocation3 + $0xc0] sm:$0xff] %v869
  %895 = vst.msk [vmem:[#allocation3 + $0xc8] sm:$0xff] %vm886, %v870
  %896 = vst [vmem:[#allocation3 + $0xf0] sm:$0xff] %v871
  %897 = vst.msk [vmem:[#allocation3 + $0xf8] sm:$0xff] %vm886, %v872
  %898 = vst [vmem:[#allocation3 + $0x120] sm:$0xff] %v873
  %899 = vst.msk [vmem:[#allocation3 + $0x128] sm:$0xff] %vm886, %v874
  %900 = vst [vmem:[#allocation3 + $0x150] sm:$0xff] %v875
  %901 = vst.msk [vmem:[#allocation3 + $0x158] sm:$0xff] %vm886, %v876
  %918 = vrot.lane.b32.xlu0 %v863, 16
  %v919 = vpop.permute.xlu0 %918
  %920 = vrot.lane.b32.xlu0 %v864, 16
  %v921 = vpop.permute.xlu0 %920
  %922 = vrot.lane.b32.xlu0 %v865, 16
  %v923 = vpop.permute.xlu0 %922
  %924 = vrot.lane.b32.xlu0 %v866, 16
  %v925 = vpop.permute.xlu0 %924
  %926 = vrot.lane.b32.xlu0 %v867, 16
  %v927 = vpop.permute.xlu0 %926
  %928 = vrot.lane.b32.xlu0 %v868, 16
  %v929 = vpop.permute.xlu0 %928
  %930 = vrot.lane.b32.xlu0 %v869, 16
  %v931 = vpop.permute.xlu0 %930
  %932 = vrot.lane.b32.xlu0 %v870, 16
  %v933 = vpop.permute.xlu0 %932
  %934 = vrot.lane.b32.xlu0 %v871, 16
  %v935 = vpop.permute.xlu0 %934
  %936 = vrot.lane.b32.xlu0 %v872, 16
  %v937 = vpop.permute.xlu0 %936
  %938 = vrot.lane.b32.xlu0 %v873, 16
  %v939 = vpop.permute.xlu0 %938
  %940 = vrot.lane.b32.xlu0 %v874, 16
  %v941 = vpop.permute.xlu0 %940
  %942 = vrot.lane.b32.xlu0 %v875, 16
  %v943 = vpop.permute.xlu0 %942
  %944 = vrot.lane.b32.xlu0 %v876, 16
  %v945 = vpop.permute.xlu0 %944
  %946 = vrot.lane.b32.xlu0 %v877, 16
  %v947 = vpop.permute.xlu0 %946
  %948 = vrot.lane.b32.xlu0 %v878, 16
  %v949 = vpop.permute.xlu0 %948
  %v950 = vsel %vm886, %v919, %v921
  %v951 = vsel %vm886, %v923, %v925
  %v952 = vsel %vm886, %v927, %v929
  %v953 = vsel %vm886, %v931, %v933
  %v954 = vsel %vm886, %v935, %v937
  %v955 = vsel %vm886, %v939, %v941
  %v956 = vsel %vm886, %v943, %v945
  %v957 = vsel %vm886, %v947, %v949
  %vm974 = vcmask 1047680
  %975 = vst.msk [vmem:[#allocation3 + $0x8] sm:$0xff] %vm974, %v919
  %976 = vst.msk [vmem:[#allocation3 + $0x10] sm:$0xff] %vm66, %v950
  %977 = vst.msk [vmem:[#allocation3 + $0x38] sm:$0xff] %vm974, %v923
  %978 = vst.msk [vmem:[#allocation3 + $0x40] sm:$0xff] %vm66, %v951
  %979 = vst.msk [vmem:[#allocation3 + $0x68] sm:$0xff] %vm974, %v927
  %980 = vst.msk [vmem:[#allocation3 + $0x70] sm:$0xff] %vm66, %v952
  %981 = vst.msk [vmem:[#allocation3 + $0x98] sm:$0xff] %vm974, %v931
  %982 = vst.msk [vmem:[#allocation3 + $0xa0] sm:$0xff] %vm66, %v953
  %983 = vst.msk [vmem:[#allocation3 + $0xc8] sm:$0xff] %vm974, %v935
  %984 = vst.msk [vmem:[#allocation3 + $0xd0] sm:$0xff] %vm66, %v954
  %985 = vst.msk [vmem:[#allocation3 + $0xf8] sm:$0xff] %vm974, %v939
  %986 = vst.msk [vmem:[#allocation3 + $0x100] sm:$0xff] %vm66, %v955
  %987 = vst.msk [vmem:[#allocation3 + $0x128] sm:$0xff] %vm974, %v943
  %988 = vst.msk [vmem:[#allocation3 + $0x130] sm:$0xff] %vm66, %v956
  %989 = vst.msk [vmem:[#allocation3 + $0x158] sm:$0xff] %vm974, %v947
  %990 = vst.msk [vmem:[#allocation3 + $0x160] sm:$0xff] %vm66, %v957
  %993 = vrot.lane.b32.xlu0 %v865, 32
  %v994 = vpop.permute.xlu0 %993
  %995 = vrot.lane.b32.xlu0 %v866, 32
  %v996 = vpop.permute.xlu0 %995
  %997 = vrot.lane.b32.xlu0 %v867, 32
  %v998 = vpop.permute.xlu0 %997
  %999 = vrot.lane.b32.xlu0 %v868, 32
  %v1000 = vpop.permute.xlu0 %999
  %1001 = vrot.lane.b32.xlu0 %v869, 32
  %v1002 = vpop.permute.xlu0 %1001
  %1003 = vrot.lane.b32.xlu0 %v870, 32
  %v1004 = vpop.permute.xlu0 %1003
  %1005 = vrot.lane.b32.xlu0 %v871, 32
  %v1006 = vpop.permute.xlu0 %1005
  %1007 = vrot.lane.b32.xlu0 %v872, 32
  %v1008 = vpop.permute.xlu0 %1007
  %1009 = vrot.lane.b32.xlu0 %v873, 32
  %v1010 = vpop.permute.xlu0 %1009
  %1011 = vrot.lane.b32.xlu0 %v874, 32
  %v1012 = vpop.permute.xlu0 %1011
  %1013 = vrot.lane.b32.xlu0 %v875, 32
  %v1014 = vpop.permute.xlu0 %1013
  %1015 = vrot.lane.b32.xlu0 %v876, 32
  %v1016 = vpop.permute.xlu0 %1015
  %1017 = vrot.lane.b32.xlu0 %v877, 32
  %v1018 = vpop.permute.xlu0 %1017
  %1019 = vrot.lane.b32.xlu0 %v878, 32
  %v1020 = vpop.permute.xlu0 %1019
  %1021 = vrot.lane.b32.xlu0 %v879, 32
  %v1022 = vpop.permute.xlu0 %1021
  %1023 = vrot.lane.b32.xlu0 %v880, 32
  %v1024 = vpop.permute.xlu0 %1023
  %v1025 = vsel %vm66, %v994, %v996
  %v1026 = vsel %vm66, %v998, %v1000
  %v1027 = vsel %vm66, %v1002, %v1004
  %v1028 = vsel %vm66, %v1006, %v1008
  %v1029 = vsel %vm66, %v1010, %v1012
  %v1030 = vsel %vm66, %v1014, %v1016
  %v1031 = vsel %vm66, %v1018, %v1020
  %v1032 = vsel %vm66, %v1022, %v1024
  %vm1049 = vcmask 1047808
  %1050 = vst.msk [vmem:[#allocation3 + $0x10] sm:$0xff] %vm1049, %v994
  %vm1051 = vcmask 392192
  %1052 = vst.msk [vmem:[#allocation3 + $0x18] sm:$0xff] %vm1051, %v1025
  %1053 = vst.msk [vmem:[#allocation3 + $0x40] sm:$0xff] %vm1049, %v998
  %1054 = vst.msk [vmem:[#allocation3 + $0x48] sm:$0xff] %vm1051, %v1026
  %1055 = vst.msk [vmem:[#allocation3 + $0x70] sm:$0xff] %vm1049, %v1002
  %1056 = vst.msk [vmem:[#allocation3 + $0x78] sm:$0xff] %vm1051, %v1027
  %1057 = vst.msk [vmem:[#allocation3 + $0xa0] sm:$0xff] %vm1049, %v1006
  %1058 = vst.msk [vmem:[#allocation3 + $0xa8] sm:$0xff] %vm1051, %v1028
  %1059 = vst.msk [vmem:[#allocation3 + $0xd0] sm:$0xff] %vm1049, %v1010
  %1060 = vst.msk [vmem:[#allocation3 + $0xd8] sm:$0xff] %vm1051, %v1029
  %1061 = vst.msk [vmem:[#allocation3 + $0x100] sm:$0xff] %vm1049, %v1014
  %1062 = vst.msk [vmem:[#allocation3 + $0x108] sm:$0xff] %vm1051, %v1030
  %1063 = vst.msk [vmem:[#allocation3 + $0x130] sm:$0xff] %vm1049, %v1018
  %1064 = vst.msk [vmem:[#allocation3 + $0x138] sm:$0xff] %vm1051, %v1031
  %1065 = vst.msk [vmem:[#allocation3 + $0x160] sm:$0xff] %vm1049, %v1022
  %1066 = vst.msk [vmem:[#allocation3 + $0x168] sm:$0xff] %vm1051, %v1032
  %1069 = vrot.lane.b32.xlu0 %v867, 48
  %v1070 = vpop.permute.xlu0 %1069
  %1071 = vrot.lane.b32.xlu0 %v868, 48
  %v1072 = vpop.permute.xlu0 %1071
  %1073 = vrot.lane.b32.xlu0 %v869, 48
  %v1074 = vpop.permute.xlu0 %1073
  %1075 = vrot.lane.b32.xlu0 %v870, 48
  %v1076 = vpop.permute.xlu0 %1075
  %1077 = vrot.lane.b32.xlu0 %v871, 48
  %v1078 = vpop.permute.xlu0 %1077
  %1079 = vrot.lane.b32.xlu0 %v872, 48
  %v1080 = vpop.permute.xlu0 %1079
  %1081 = vrot.lane.b32.xlu0 %v873, 48
  %v1082 = vpop.permute.xlu0 %1081
  %1083 = vrot.lane.b32.xlu0 %v874, 48
  %v1084 = vpop.permute.xlu0 %1083
  %1085 = vrot.lane.b32.xlu0 %v875, 48
  %v1086 = vpop.permute.xlu0 %1085
  %1087 = vrot.lane.b32.xlu0 %v876, 48
  %v1088 = vpop.permute.xlu0 %1087
  %1089 = vrot.lane.b32.xlu0 %v877, 48
  %v1090 = vpop.permute.xlu0 %1089
  %1091 = vrot.lane.b32.xlu0 %v878, 48
  %v1092 = vpop.permute.xlu0 %1091
  %1093 = vrot.lane.b32.xlu0 %v879, 48
  %v1094 = vpop.permute.xlu0 %1093
  %1095 = vrot.lane.b32.xlu0 %v880, 48
  %v1096 = vpop.permute.xlu0 %1095
  %1097 = vrot.lane.b32.xlu0 %v881, 48
  %v1098 = vpop.permute.xlu0 %1097
  %1099 = vrot.lane.b32.xlu0 %v882, 48
  %v1100 = vpop.permute.xlu0 %1099
  %v1101 = vsel %vm1051, %v1070, %v1072
  %v1102 = vsel %vm1051, %v1074, %v1076
  %v1103 = vsel %vm1051, %v1078, %v1080
  %v1104 = vsel %vm1051, %v1082, %v1084
  %v1105 = vsel %vm1051, %v1086, %v1088
  %v1106 = vsel %vm1051, %v1090, %v1092
  %v1107 = vsel %vm1051, %v1094, %v1096
  %v1108 = vsel %vm1051, %v1098, %v1100
  %vm1125 = vcmask 1047936
  %1126 = vst.msk [vmem:[#allocation3 + $0x18] sm:$0xff] %vm1125, %v1070
  %vm1127 = vcmask 523264
  %1128 = vst.msk [vmem:[#allocation3 + $0x20] sm:$0xff] %vm1127, %v1101
  %1129 = vst.msk [vmem:[#allocation3 + $0x48] sm:$0xff] %vm1125, %v1074
  %1130 = vst.msk [vmem:[#allocation3 + $0x50] sm:$0xff] %vm1127, %v1102
  %1131 = vst.msk [vmem:[#allocation3 + $0x78] sm:$0xff] %vm1125, %v1078
  %1132 = vst.msk [vmem:[#allocation3 + $0x80] sm:$0xff] %vm1127, %v1103
  %1133 = vst.msk [vmem:[#allocation3 + $0xa8] sm:$0xff] %vm1125, %v1082
  %1134 = vst.msk [vmem:[#allocation3 + $0xb0] sm:$0xff] %vm1127, %v1104
  %1135 = vst.msk [vmem:[#allocation3 + $0xd8] sm:$0xff] %vm1125, %v1086
  %1136 = vst.msk [vmem:[#allocation3 + $0xe0] sm:$0xff] %vm1127, %v1105
  %1137 = vst.msk [vmem:[#allocation3 + $0x108] sm:$0xff] %vm1125, %v1090
  %1138 = vst.msk [vmem:[#allocation3 + $0x110] sm:$0xff] %vm1127, %v1106
  %1139 = vst.msk [vmem:[#allocation3 + $0x138] sm:$0xff] %vm1125, %v1094
  %1140 = vst.msk [vmem:[#allocation3 + $0x140] sm:$0xff] %vm1127, %v1107
  %1141 = vst.msk [vmem:[#allocation3 + $0x168] sm:$0xff] %vm1125, %v1098
  %1142 = vst.msk [vmem:[#allocation3 + $0x170] sm:$0xff] %vm1127, %v1108
  %1145 = vrot.lane.b32.xlu0 %v869, 64
  %v1146 = vpop.permute.xlu0 %1145
  %1147 = vrot.lane.b32.xlu0 %v870, 64
  %v1148 = vpop.permute.xlu0 %1147
  %1149 = vrot.lane.b32.xlu0 %v871, 64
  %v1150 = vpop.permute.xlu0 %1149
  %1151 = vrot.lane.b32.xlu0 %v872, 64
  %v1152 = vpop.permute.xlu0 %1151
  %1153 = vrot.lane.b32.xlu0 %v873, 64
  %v1154 = vpop.permute.xlu0 %1153
  %1155 = vrot.lane.b32.xlu0 %v874, 64
  %v1156 = vpop.permute.xlu0 %1155
  %1157 = vrot.lane.b32.xlu0 %v875, 64
  %v1158 = vpop.permute.xlu0 %1157
  %1159 = vrot.lane.b32.xlu0 %v876, 64
  %v1160 = vpop.permute.xlu0 %1159
  %1161 = vrot.lane.b32.xlu0 %v877, 64
  %v1162 = vpop.permute.xlu0 %1161
  %1163 = vrot.lane.b32.xlu0 %v878, 64
  %v1164 = vpop.permute.xlu0 %1163
  %1165 = vrot.lane.b32.xlu0 %v879, 64
  %v1166 = vpop.permute.xlu0 %1165
  %1167 = vrot.lane.b32.xlu0 %v880, 64
  %v1168 = vpop.permute.xlu0 %1167
  %1169 = vrot.lane.b32.xlu0 %v881, 64
  %v1170 = vpop.permute.xlu0 %1169
  %1171 = vrot.lane.b32.xlu0 %v882, 64
  %v1172 = vpop.permute.xlu0 %1171
  %1173 = vrot.lane.b32.xlu0 %v883, 64
  %v1174 = vpop.permute.xlu0 %1173
  %1175 = vrot.lane.b32.xlu0 %v884, 64
  %v1176 = vpop.permute.xlu0 %1175
  %v1177 = vsel %vm1127, %v1146, %v1148
  %v1178 = vsel %vm1127, %v1150, %v1152
  %v1179 = vsel %vm1127, %v1154, %v1156
  %v1180 = vsel %vm1127, %v1158, %v1160
  %v1181 = vsel %vm1127, %v1162, %v1164
  %v1182 = vsel %vm1127, %v1166, %v1168
  %v1183 = vsel %vm1127, %v1170, %v1172
  %v1184 = vsel %vm1127, %v1174, %v1176
  %vm1201 = vcmask 1048064
  %1202 = vst.msk [vmem:[#allocation3 + $0x20] sm:$0xff] %vm1201, %v1146
  %vm1203 = vcmask 654336
  %1204 = vst.msk [vmem:[#allocation3 + $0x28] sm:$0xff] %vm1203, %v1177
  %1205 = vst.msk [vmem:[#allocation3 + $0x50] sm:$0xff] %vm1201, %v1150
  %1206 = vst.msk [vmem:[#allocation3 + $0x58] sm:$0xff] %vm1203, %v1178
  %1207 = vst.msk [vmem:[#allocation3 + $0x80] sm:$0xff] %vm1201, %v1154
  %1208 = vst.msk [vmem:[#allocation3 + $0x88] sm:$0xff] %vm1203, %v1179
  %1209 = vst.msk [vmem:[#allocation3 + $0xb0] sm:$0xff] %vm1201, %v1158
  %1210 = vst.msk [vmem:[#allocation3 + $0xb8] sm:$0xff] %vm1203, %v1180
  %1211 = vst.msk [vmem:[#allocation3 + $0xe0] sm:$0xff] %vm1201, %v1162
  %1212 = vst.msk [vmem:[#allocation3 + $0xe8] sm:$0xff] %vm1203, %v1181
  %1213 = vst.msk [vmem:[#allocation3 + $0x110] sm:$0xff] %vm1201, %v1166
  %1214 = vst.msk [vmem:[#allocation3 + $0x118] sm:$0xff] %vm1203, %v1182
  %1215 = vst.msk [vmem:[#allocation3 + $0x140] sm:$0xff] %vm1201, %v1170
  %1216 = vst.msk [vmem:[#allocation3 + $0x148] sm:$0xff] %vm1203, %v1183
  %1217 = vst.msk [vmem:[#allocation3 + $0x170] sm:$0xff] %vm1201, %v1174
  %1218 = vst.msk [vmem:[#allocation3 + $0x178] sm:$0xff] %vm1203, %v1184
  %v1219 = vld [vmem:[#allocation3] sm:$0xff]
  %v1220 = vld [vmem:[#allocation3 + $0x8] sm:$0xff]
  %v1221 = vld [vmem:[#allocation3 + $0x10] sm:$0xff]
  %v1222 = vld [vmem:[#allocation3 + $0x18] sm:$0xff]
  %v1223 = vld [vmem:[#allocation3 + $0x20] sm:$0xff]
  %v1224 = vld [vmem:[#allocation3 + $0x28] sm:$0xff]
  %v1225 = vld [vmem:[#allocation3 + $0x30] sm:$0xff]
  %v1226 = vld [vmem:[#allocation3 + $0x38] sm:$0xff]
  %v1227 = vld [vmem:[#allocation3 + $0x40] sm:$0xff]
  %v1228 = vld [vmem:[#allocation3 + $0x48] sm:$0xff]
  %v1229 = vld [vmem:[#allocation3 + $0x50] sm:$0xff]
  %v1230 = vld [vmem:[#allocation3 + $0x58] sm:$0xff]
  %v1231 = vld [vmem:[#allocation3 + $0x60] sm:$0xff]
  %v1232 = vld [vmem:[#allocation3 + $0x68] sm:$0xff]
  %v1233 = vld [vmem:[#allocation3 + $0x70] sm:$0xff]
  %v1234 = vld [vmem:[#allocation3 + $0x78] sm:$0xff]
  %v1235 = vld [vmem:[#allocation3 + $0x80] sm:$0xff]
  %v1236 = vld [vmem:[#allocation3 + $0x88] sm:$0xff]
  %v1237 = vld [vmem:[#allocation3 + $0x90] sm:$0xff]
  %v1238 = vld [vmem:[#allocation3 + $0x98] sm:$0xff]
  %v1239 = vld [vmem:[#allocation3 + $0xa0] sm:$0xff]
  %v1240 = vld [vmem:[#allocation3 + $0xa8] sm:$0xff]
  %v1241 = vld [vmem:[#allocation3 + $0xb0] sm:$0xff]
  %v1242 = vld [vmem:[#allocation3 + $0xb8] sm:$0xff]
  %v1243 = vld [vmem:[#allocation3 + $0xc0] sm:$0xff]
  %v1244 = vld [vmem:[#allocation3 + $0xc8] sm:$0xff]
  %v1245 = vld [vmem:[#allocation3 + $0xd0] sm:$0xff]
  %v1246 = vld [vmem:[#allocation3 + $0xd8] sm:$0xff]
  %v1247 = vld [vmem:[#allocation3 + $0xe0] sm:$0xff]
  %v1248 = vld [vmem:[#allocation3 + $0xe8] sm:$0xff]
  %v1249 = vld [vmem:[#allocation3 + $0xf0] sm:$0xff]
  %v1250 = vld [vmem:[#allocation3 + $0xf8] sm:$0xff]
  %v1251 = vld [vmem:[#allocation3 + $0x100] sm:$0xff]
  %v1252 = vld [vmem:[#allocation3 + $0x108] sm:$0xff]
  %v1253 = vld [vmem:[#allocation3 + $0x110] sm:$0xff]
  %v1254 = vld [vmem:[#allocation3 + $0x118] sm:$0xff]
  %v1255 = vld [vmem:[#allocation3 + $0x120] sm:$0xff]
  %v1256 = vld [vmem:[#allocation3 + $0x128] sm:$0xff]
  %v1257 = vld [vmem:[#allocation3 + $0x130] sm:$0xff]
  %v1258 = vld [vmem:[#allocation3 + $0x138] sm:$0xff]
  %v1259 = vld [vmem:[#allocation3 + $0x140] sm:$0xff]
  %v1260 = vld [vmem:[#allocation3 + $0x148] sm:$0xff]
  %v1261 = vld [vmem:[#allocation3 + $0x150] sm:$0xff]
  %v1262 = vld [vmem:[#allocation3 + $0x158] sm:$0xff]
  %v1263 = vld [vmem:[#allocation3 + $0x160] sm:$0xff]
  %v1264 = vld [vmem:[#allocation3 + $0x168] sm:$0xff]
  %v1265 = vld [vmem:[#allocation3 + $0x170] sm:$0xff]
  %v1266 = vld [vmem:[#allocation3 + $0x178] sm:$0xff]
  %v1267 = vld [vmem:[%s3] sm:$0xff]
  %v1268 = vld [vmem:[%s3 + $0x8] sm:$0xff]
  %v1269 = vld [vmem:[%s3 + $0x10] sm:$0xff]
  %v1270 = vld [vmem:[%s3 + $0x18] sm:$0xff]
  %v1271 = vld [vmem:[%s3 + $0x20] sm:$0xff]
  %v1272 = vld [vmem:[%s3 + $0x28] sm:$0xff]
  %v1273 = vld [vmem:[%s3 + $0x30] sm:$0xff]
  %v1274 = vld [vmem:[%s3 + $0x38] sm:$0xff]
  %v1275 = vld [vmem:[%s3 + $0x40] sm:$0xff]
  %v1276 = vld [vmem:[%s3 + $0x48] sm:$0xff]
  %v1277 = vld [vmem:[%s3 + $0x50] sm:$0xff]
  %v1278 = vld [vmem:[%s3 + $0x58] sm:$0xff]
  %v1279 = vld [vmem:[%s3 + $0x60] sm:$0xff]
  %v1280 = vld [vmem:[%s3 + $0x68] sm:$0xff]
  %v1281 = vld [vmem:[%s3 + $0x70] sm:$0xff]
  %v1282 = vld [vmem:[%s3 + $0x78] sm:$0xff]
  %v1283 = vld [vmem:[%s3 + $0x80] sm:$0xff]
  %v1284 = vld [vmem:[%s3 + $0x88] sm:$0xff]
  %v1285 = vld [vmem:[%s3 + $0x90] sm:$0xff]
  %v1286 = vld [vmem:[%s3 + $0x98] sm:$0xff]
  %v1287 = vld [vmem:[%s3 + $0xa0] sm:$0xff]
  %v1288 = vld [vmem:[%s3 + $0xa8] sm:$0xff]
  %v1289 = vld [vmem:[%s3 + $0xb0] sm:$0xff]
  %v1290 = vld [vmem:[%s3 + $0xb8] sm:$0xff]
  %v1291 = vld [vmem:[%s3 + $0xc0] sm:$0xff]
  %v1292 = vld [vmem:[%s3 + $0xc8] sm:$0xff]
  %v1293 = vld [vmem:[%s3 + $0xd0] sm:$0xff]
  %v1294 = vld [vmem:[%s3 + $0xd8] sm:$0xff]
  %v1295 = vld [vmem:[%s3 + $0xe0] sm:$0xff]
  %v1296 = vld [vmem:[%s3 + $0xe8] sm:$0xff]
  %v1297 = vld [vmem:[%s3 + $0xf0] sm:$0xff]
  %v1298 = vld [vmem:[%s3 + $0xf8] sm:$0xff]
  %v1299 = vld [vmem:[%s3 + $0x100] sm:$0xff]
  %v1300 = vld [vmem:[%s3 + $0x108] sm:$0xff]
  %v1301 = vld [vmem:[%s3 + $0x110] sm:$0xff]
  %v1302 = vld [vmem:[%s3 + $0x118] sm:$0xff]
  %v1303 = vld [vmem:[%s3 + $0x120] sm:$0xff]
  %v1304 = vld [vmem:[%s3 + $0x128] sm:$0xff]
  %v1305 = vld [vmem:[%s3 + $0x130] sm:$0xff]
  %v1306 = vld [vmem:[%s3 + $0x138] sm:$0xff]
  %v1307 = vld [vmem:[%s3 + $0x140] sm:$0xff]
  %v1308 = vld [vmem:[%s3 + $0x148] sm:$0xff]
  %v1309 = vld [vmem:[%s3 + $0x150] sm:$0xff]
  %v1310 = vld [vmem:[%s3 + $0x158] sm:$0xff]
  %v1311 = vld [vmem:[%s3 + $0x160] sm:$0xff]
  %v1312 = vld [vmem:[%s3 + $0x168] sm:$0xff]
  %v1313 = vld [vmem:[%s3 + $0x170] sm:$0xff]
  %v1314 = vld [vmem:[%s3 + $0x178] sm:$0xff]
  %v1315 = vld [vmem:[%s3 + $0x180] sm:$0xff]
  %v1316 = vld [vmem:[%s3 + $0x188] sm:$0xff]
  %v1317 = vld [vmem:[%s3 + $0x190] sm:$0xff]
  %v1318 = vld [vmem:[%s3 + $0x198] sm:$0xff]
  %v1319 = vld [vmem:[%s3 + $0x1a0] sm:$0xff]
  %v1320 = vld [vmem:[%s3 + $0x1a8] sm:$0xff]
  %v1321 = vld [vmem:[%s3 + $0x1b0] sm:$0xff]
  %v1322 = vld [vmem:[%s3 + $0x1b8] sm:$0xff]
  %v1323 = vld [vmem:[%s3 + $0x1c0] sm:$0xff]
  %v1324 = vld [vmem:[%s3 + $0x1c8] sm:$0xff]
  %v1325 = vld [vmem:[%s3 + $0x1d0] sm:$0xff]
  %v1326 = vld [vmem:[%s3 + $0x1d8] sm:$0xff]
  %v1327 = vld [vmem:[%s3 + $0x1e0] sm:$0xff]
  %v1328 = vld [vmem:[%s3 + $0x1e8] sm:$0xff]
  %v1329 = vld [vmem:[%s3 + $0x1f0] sm:$0xff]
  %v1330 = vld [vmem:[%s3 + $0x1f8] sm:$0xff]
  %v1331 = vld [vmem:[%s3 + $0x200] sm:$0xff]
  %v1332 = vld [vmem:[%s3 + $0x208] sm:$0xff]
  %v1333 = vld [vmem:[%s3 + $0x210] sm:$0xff]
  %v1334 = vld [vmem:[%s3 + $0x218] sm:$0xff]
  %v1335 = vld [vmem:[%s3 + $0x220] sm:$0xff]
  %v1336 = vld [vmem:[%s3 + $0x228] sm:$0xff]
  %v1337 = vld [vmem:[%s3 + $0x230] sm:$0xff]
  %v1338 = vld [vmem:[%s3 + $0x238] sm:$0xff]
  %v1339 = vld [vmem:[%s3 + $0x240] sm:$0xff]
  %v1340 = vld [vmem:[%s3 + $0x248] sm:$0xff]
  %v1341 = vld [vmem:[%s3 + $0x250] sm:$0xff]
  %v1342 = vld [vmem:[%s3 + $0x258] sm:$0xff]
  %v1343 = vld [vmem:[%s3 + $0x260] sm:$0xff]
  %v1344 = vld [vmem:[%s3 + $0x268] sm:$0xff]
  %v1345 = vld [vmem:[%s3 + $0x270] sm:$0xff]
  %v1346 = vld [vmem:[%s3 + $0x278] sm:$0xff]
  %v1347 = vld [vmem:[%s3 + $0x280] sm:$0xff]
  %v1348 = vld [vmem:[%s3 + $0x288] sm:$0xff]
  %v1349 = vld [vmem:[%s3 + $0x290] sm:$0xff]
  %v1350 = vld [vmem:[%s3 + $0x298] sm:$0xff]
  %v1351 = vld [vmem:[%s3 + $0x2a0] sm:$0xff]
  %v1352 = vld [vmem:[%s3 + $0x2a8] sm:$0xff]
  %v1353 = vld [vmem:[%s3 + $0x2b0] sm:$0xff]
  %v1354 = vld [vmem:[%s3 + $0x2b8] sm:$0xff]
  %v1355 = vld [vmem:[%s3 + $0x2c0] sm:$0xff]
  %v1356 = vld [vmem:[%s3 + $0x2c8] sm:$0xff]
  %v1357 = vld [vmem:[%s4] sm:$0x1]
  %v1359 = vlaneseq
  %v1360 = vshrl.u32 %v1359, 7
  %v1361 = vsub.s32 0, %v1360
  %v1362 = vrot.slane %v1357, %v1361
  %v1365 = vsel %vm1203, %v1224, 0
  %v1368 = vsel %vm1203, %v1230, 0
  %v1371 = vsel %vm1203, %v1236, 0
  %v1374 = vsel %vm1203, %v1242, 0
  %v1377 = vsel %vm1203, %v1248, 0
  %v1380 = vsel %vm1203, %v1254, 0
  %v1383 = vsel %vm1203, %v1260, 0
  %v1386 = vsel %vm1203, %v1266, 0
  %1388 = vmatprep.subr.mxu0 0.0
  %1389 = vmatpush1.msra.mxu0 %v1267
  %1390 = vmatprep.subr.mxu0 0.0
  %1391 = vmatpush1.msra.mxu0 %v1268
  %1392 = vmatprep.subr.mxu0 0.0
  %1393 = vmatpush1.msra.mxu0 %v1269
  %1394 = vmatprep.subr.mxu0 0.0
  %1395 = vmatpush1.msra.mxu0 %v1270
  %1396 = vmatprep.subr.mxu0 0.0
  %1397 = vmatpush1.msra.mxu0 %v1271
  %1398 = vmatprep.subr.mxu0 0.0
  %1399 = vmatpush1.msra.mxu0 %v1272
  %1400 = vmatprep.subr.mxu0 0.0
  %1401 = vmatpush1.msra.mxu0 %v1273
  %1402 = vmatprep.subr.mxu0 0.0
  %1403 = vmatpush1.msra.mxu0 %v1274
  %1404 = vmatprep.subr.mxu0 0.0
  %1405 = vmatpush1.msra.mxu0 %v1275
  %1406 = vmatprep.subr.mxu0 0.0
  %1407 = vmatpush1.msra.mxu0 %v1276
  %1408 = vmatprep.subr.mxu0 0.0
  %1409 = vmatpush1.msra.mxu0 %v1277
  %1410 = vmatprep.subr.mxu0 0.0
  %1411 = vmatpush1.msra.mxu0 %v1278
  %1412 = vmatprep.subr.mxu0 0.0
  %1413 = vmatpush1.msra.mxu0 %v1279
  %1414 = vmatprep.subr.mxu0 0.0
  %1415 = vmatpush1.msra.mxu0 %v1280
  %1416 = vmatprep.subr.mxu0 0.0
  %1417 = vmatpush1.msra.mxu0 %v1281
  %1418 = vmatprep.subr.mxu0 0.0
  %1419 = vmatpush1.msra.mxu0 %v1282
  %1420 = vmatprep.subr.mxu0 0.0
  %1421 = vmatpush1.msra.mxu0 %v1283
  %1422 = vmatprep.subr.mxu0 0.0
  %1423 = vmatpush1.msra.mxu0 %v1284
  %1424 = vmatprep.subr.mxu0 0.0
  %1425 = vmatpush1.msra.mxu0 %v1285
  %1426 = vmatprep.subr.mxu0 0.0
  %1427 = vmatpush1.msra.mxu0 %v1286
  %1428 = vmatprep.subr.mxu0 0.0
  %1429 = vmatpush1.msra.mxu0 %v1287
  %1430 = vmatprep.subr.mxu0 0.0
  %1431 = vmatpush1.msra.mxu0 %v1288
  %1432 = vmatprep.subr.mxu0 0.0
  %1433 = vmatpush1.msra.mxu0 %v1289
  %1434 = vmatprep.subr.mxu0 0.0
  %1435 = vmatpush1.msra.mxu0 %v1290
  %1436 = vmatprep.subr.mxu0 0.0
  %1437 = vmatpush1.msra.mxu0 %v1291
  %1438 = vmatprep.subr.mxu0 0.0
  %1439 = vmatpush1.msra.mxu0 %v1292
  %1440 = vmatprep.subr.mxu0 0.0
  %1441 = vmatpush1.msra.mxu0 %v1293
  %1442 = vmatprep.subr.mxu0 0.0
  %1443 = vmatpush1.msra.mxu0 %v1294
  %1444 = vmatprep.subr.mxu0 0.0
  %1445 = vmatpush1.msra.mxu0 %v1295
  %1446 = vmatprep.subr.mxu0 0.0
  %1447 = vmatpush1.msra.mxu0 %v1296
  %1448 = vmatprep.subr.mxu0 0.0
  %1449 = vmatpush1.msra.mxu0 %v1297
  %1450 = vmatprep.subr.mxu0 0.0
  %1451 = vmatpush1.msra.mxu0 %v1298
  %1452 = vmatprep.mubr.f32.mxu0 %v1220
  %1453 = vmatmul.mubr.f32.gmra.mrb[0].mxu0 %v1219
  %v1454 = vpop.f32.mrb[0].mxu0
  %v1455 = vadd.f32 %v1362, %v1454
  %v1456 = vpop.f32.mrb[0].mxu0
  %1457 = vmatprep.mubr.f32.mxu0 %v1226
  %1458 = vmatmul.mubr.f32.gmra.mrb[0].mxu0 %v1225
  %v1459 = vpop.f32.mrb[0].mxu0
  %v1460 = vadd.f32 %v1362, %v1459
  %v1461 = vpop.f32.mrb[0].mxu0
  %1462 = vmatprep.mubr.f32.mxu0 %v1232
  %1463 = vmatmul.mubr.f32.gmra.mrb[0].mxu0 %v1231
  %v1464 = vpop.f32.mrb[0].mxu0
  %v1465 = vadd.f32 %v1362, %v1464
  %v1466 = vpop.f32.mrb[0].mxu0
  %1467 = vmatprep.mubr.f32.mxu0 %v1238
  %1468 = vmatmul.mubr.f32.gmra.mrb[0].mxu0 %v1237
  %v1469 = vpop.f32.mrb[0].mxu0
  %v1470 = vadd.f32 %v1362, %v1469
  %v1471 = vpop.f32.mrb[0].mxu0
  %1472 = vmatprep.mubr.f32.mxu0 %v1244
  %1473 = vmatmul.mubr.f32.gmra.mrb[0].mxu0 %v1243
  %v1474 = vpop.f32.mrb[0].mxu0
  %v1475 = vadd.f32 %v1362, %v1474
  %v1476 = vpop.f32.mrb[0].mxu0
  %1477 = vmatprep.mubr.f32.mxu0 %v1250
  %1478 = vmatmul.mubr.f32.gmra.mrb[0].mxu0 %v1249
  %v1479 = vpop.f32.mrb[0].mxu0
  %v1480 = vadd.f32 %v1362, %v1479
  %v1481 = vpop.f32.mrb[0].mxu0
  %1482 = vmatprep.mubr.f32.mxu0 %v1256
  %1483 = vmatmul.mubr.f32.gmra.mrb[0].mxu0 %v1255
  %v1484 = vpop.f32.mrb[0].mxu0
  %v1485 = vadd.f32 %v1362, %v1484
  %v1486 = vpop.f32.mrb[0].mxu0
  %1487 = vmatprep.mubr.f32.mxu0 %v1262
  %1488 = vmatmul.mubr.f32.gmra.mrb[0].mxu0 %v1261
  %v1489 = vpop.f32.mrb[0].mxu0
  %v1490 = vadd.f32 %v1362, %v1489
  %v1491 = vpop.f32.mrb[0].mxu0
  %1492 = vdwg.mxu0
  %1493 = vmatprep.subr.mxu0 0.0
  %1494 = vmatpush1.msra.mxu0 %v1299
  %1495 = vmatprep.subr.mxu0 0.0
  %1496 = vmatpush1.msra.mxu0 %v1300
  %1497 = vmatprep.subr.mxu0 0.0
  %1498 = vmatpush1.msra.mxu0 %v1301
  %1499 = vmatprep.subr.mxu0 0.0
  %1500 = vmatpush1.msra.mxu0 %v1302
  %1501 = vmatprep.subr.mxu0 0.0
  %1502 = vmatpush1.msra.mxu0 %v1303
  %1503 = vmatprep.subr.mxu0 0.0
  %1504 = vmatpush1.msra.mxu0 %v1304
  %1505 = vmatprep.subr.mxu0 0.0
  %1506 = vmatpush1.msra.mxu0 %v1305
  %1507 = vmatprep.subr.mxu0 0.0
  %1508 = vmatpush1.msra.mxu0 %v1306
  %1509 = vmatprep.subr.mxu0 0.0
  %1510 = vmatpush1.msra.mxu0 %v1307
  %1511 = vmatprep.subr.mxu0 0.0
  %1512 = vmatpush1.msra.mxu0 %v1308
  %1513 = vmatprep.subr.mxu0 0.0
  %1514 = vmatpush1.msra.mxu0 %v1309
  %1515 = vmatprep.subr.mxu0 0.0
  %1516 = vmatpush1.msra.mxu0 %v1310
  %1517 = vmatprep.subr.mxu0 0.0
  %1518 = vmatpush1.msra.mxu0 %v1311
  %1519 = vmatprep.subr.mxu0 0.0
  %1520 = vmatpush1.msra.mxu0 %v1312
  %1521 = vmatprep.subr.mxu0 0.0
  %1522 = vmatpush1.msra.mxu0 %v1313
  %1523 = vmatprep.subr.mxu0 0.0
  %1524 = vmatpush1.msra.mxu0 %v1314
  %1525 = vmatprep.subr.mxu0 0.0
  %1526 = vmatpush1.msra.mxu0 %v1315
  %1527 = vmatprep.subr.mxu0 0.0
  %1528 = vmatpush1.msra.mxu0 %v1316
  %1529 = vmatprep.subr.mxu0 0.0
  %1530 = vmatpush1.msra.mxu0 %v1317
  %1531 = vmatprep.subr.mxu0 0.0
  %1532 = vmatpush1.msra.mxu0 %v1318
  %1533 = vmatprep.subr.mxu0 0.0
  %1534 = vmatpush1.msra.mxu0 %v1319
  %1535 = vmatprep.subr.mxu0 0.0
  %1536 = vmatpush1.msra.mxu0 %v1320
  %1537 = vmatprep.subr.mxu0 0.0
  %1538 = vmatpush1.msra.mxu0 %v1321
  %1539 = vmatprep.subr.mxu0 0.0
  %1540 = vmatpush1.msra.mxu0 %v1322
  %1541 = vmatprep.subr.mxu0 0.0
  %1542 = vmatpush1.msra.mxu0 %v1323
  %1543 = vmatprep.subr.mxu0 0.0
  %1544 = vmatpush1.msra.mxu0 %v1324
  %1545 = vmatprep.subr.mxu0 0.0
  %1546 = vmatpush1.msra.mxu0 %v1325
  %1547 = vmatprep.subr.mxu0 0.0
  %1548 = vmatpush1.msra.mxu0 %v1326
  %1549 = vmatprep.subr.mxu0 0.0
  %1550 = vmatpush1.msra.mxu0 %v1327
  %1551 = vmatprep.subr.mxu0 0.0
  %1552 = vmatpush1.msra.mxu0 %v1328
  %1553 = vmatprep.subr.mxu0 0.0
  %1554 = vmatpush1.msra.mxu0 %v1329
  %1555 = vmatprep.subr.mxu0 0.0
  %1556 = vmatpush1.msra.mxu0 %v1330
  %1557 = vmatprep.mubr.f32.mxu0 %v1222
  %1558 = vmatmul.mubr.f32.gmra.mrb[0].mxu0 %v1221
  %v1559 = vpop.f32.mrb[0].mxu0
  %v1560 = vadd.f32 %v1455, %v1559
  %v1561 = vpop.f32.mrb[0].mxu0
  %1562 = vmatprep.mubr.f32.mxu0 %v1228
  %1563 = vmatmul.mubr.f32.gmra.mrb[0].mxu0 %v1227
  %v1564 = vpop.f32.mrb[0].mxu0
  %v1565 = vadd.f32 %v1460, %v1564
  %v1566 = vpop.f32.mrb[0].mxu0
  %1567 = vmatprep.mubr.f32.mxu0 %v1234
  %1568 = vmatmul.mubr.f32.gmra.mrb[0].mxu0 %v1233
  %v1569 = vpop.f32.mrb[0].mxu0
  %v1570 = vadd.f32 %v1465, %v1569
  %v1571 = vpop.f32.mrb[0].mxu0
  %1572 = vmatprep.mubr.f32.mxu0 %v1240
  %1573 = vmatmul.mubr.f32.gmra.mrb[0].mxu0 %v1239
  %v1574 = vpop.f32.mrb[0].mxu0
  %v1575 = vadd.f32 %v1470, %v1574
  %v1576 = vpop.f32.mrb[0].mxu0
  %1577 = vmatprep.mubr.f32.mxu0 %v1246
  %1578 = vmatmul.mubr.f32.gmra.mrb[0].mxu0 %v1245
  %v1579 = vpop.f32.mrb[0].mxu0
  %v1580 = vadd.f32 %v1475, %v1579
  %v1581 = vpop.f32.mrb[0].mxu0
  %1582 = vmatprep.mubr.f32.mxu0 %v1252
  %1583 = vmatmul.mubr.f32.gmra.mrb[0].mxu0 %v1251
  %v1584 = vpop.f32.mrb[0].mxu0
  %v1585 = vadd.f32 %v1480, %v1584
  %v1586 = vpop.f32.mrb[0].mxu0
  %1587 = vmatprep.mubr.f32.mxu0 %v1258
  %1588 = vmatmul.mubr.f32.gmra.mrb[0].mxu0 %v1257
  %v1589 = vpop.f32.mrb[0].mxu0
  %v1590 = vadd.f32 %v1485, %v1589
  %v1591 = vpop.f32.mrb[0].mxu0
  %1592 = vmatprep.mubr.f32.mxu0 %v1264
  %1593 = vmatmul.mubr.f32.gmra.mrb[0].mxu0 %v1263
  %v1594 = vpop.f32.mrb[0].mxu0
  %v1595 = vadd.f32 %v1490, %v1594
  %v1596 = vpop.f32.mrb[0].mxu0
  %1597 = vdwg.mxu0
  %1598 = vmatprep.subr.mxu0 0.0
  %1599 = vmatpush1.msra.mxu0 %v1331
  %1600 = vmatprep.subr.mxu0 0.0
  %1601 = vmatpush1.msra.mxu0 %v1332
  %1602 = vmatprep.subr.mxu0 0.0
  %1603 = vmatpush1.msra.mxu0 %v1333
  %1604 = vmatprep.subr.mxu0 0.0
  %1605 = vmatpush1.msra.mxu0 %v1334
  %1606 = vmatprep.subr.mxu0 0.0
  %1607 = vmatpush1.msra.mxu0 %v1335
  %1608 = vmatprep.subr.mxu0 0.0
  %1609 = vmatpush1.msra.mxu0 %v1336
  %1610 = vmatprep.subr.mxu0 0.0
  %1611 = vmatpush1.msra.mxu0 %v1337
  %1612 = vmatprep.subr.mxu0 0.0
  %1613 = vmatpush1.msra.mxu0 %v1338
  %1614 = vmatprep.subr.mxu0 0.0
  %1615 = vmatpush1.msra.mxu0 %v1339
  %1616 = vmatprep.subr.mxu0 0.0
  %1617 = vmatpush1.msra.mxu0 %v1340
  %1618 = vmatprep.subr.mxu0 0.0
  %1619 = vmatpush1.msra.mxu0 %v1341
  %1620 = vmatprep.subr.mxu0 0.0
  %1621 = vmatpush1.msra.mxu0 %v1342
  %1622 = vmatprep.subr.mxu0 0.0
  %1623 = vmatpush1.msra.mxu0 %v1343
  %1624 = vmatprep.subr.mxu0 0.0
  %1625 = vmatpush1.msra.mxu0 %v1344
  %1626 = vmatprep.subr.mxu0 0.0
  %1627 = vmatpush1.msra.mxu0 %v1345
  %1628 = vmatprep.subr.mxu0 0.0
  %1629 = vmatpush1.msra.mxu0 %v1346
  %1630 = vmatprep.subr.mxu0 0.0
  %1631 = vmatpush1.msra.mxu0 %v1347
  %1632 = vmatprep.subr.mxu0 0.0
  %1633 = vmatpush1.msra.mxu0 %v1348
  %1634 = vmatprep.subr.mxu0 0.0
  %1635 = vmatpush1.msra.mxu0 %v1349
  %1636 = vmatprep.subr.mxu0 0.0
  %1637 = vmatpush1.msra.mxu0 %v1350
  %1638 = vmatprep.subr.mxu0 0.0
  %1639 = vmatpush1.msra.mxu0 %v1351
  %1640 = vmatprep.subr.mxu0 0.0
  %1641 = vmatpush1.msra.mxu0 %v1352
  %1642 = vmatprep.subr.mxu0 0.0
  %1643 = vmatpush1.msra.mxu0 %v1353
  %1644 = vmatprep.subr.mxu0 0.0
  %1645 = vmatpush1.msra.mxu0 %v1354
  %1646 = vmatprep.subr.mxu0 0.0
  %1647 = vmatpush1.msra.mxu0 %v1355
  %1648 = vmatprep.subr.mxu0 0.0
  %1649 = vmatpush1.msra.mxu0 %v1356
  %1650 = vmatprep.subr.mxu0 0.0
  %1651 = vmatpush1.msra.mxu0 0.0
  %1652 = vmatprep.subr.mxu0 0.0
  %1653 = vmatpush1.msra.mxu0 0.0
  %1654 = vmatprep.subr.mxu0 0.0
  %1655 = vmatpush1.msra.mxu0 0.0
  %1656 = vmatprep.subr.mxu0 0.0
  %1657 = vmatpush1.msra.mxu0 0.0
  %1658 = vmatprep.subr.mxu0 0.0
  %1659 = vmatpush1.msra.mxu0 0.0
  %1660 = vmatprep.subr.mxu0 0.0
  %1661 = vmatpush1.msra.mxu0 0.0
  %1662 = vmatprep.mubr.f32.mxu0 %v1365
  %1663 = vmatmul.mubr.f32.gmra.mrb[0].mxu0 %v1223
  %v1664 = vpop.f32.mrb[0].mxu0
  %v1665 = vadd.f32 %v1560, %v1664
  %v1666 = vpop.f32.mrb[0].mxu0
  %1667 = vmatprep.mubr.f32.mxu0 %v1368
  %1668 = vmatmul.mubr.f32.gmra.mrb[0].mxu0 %v1229
  %v1669 = vpop.f32.mrb[0].mxu0
  %v1670 = vadd.f32 %v1565, %v1669
  %v1671 = vpop.f32.mrb[0].mxu0
  %1672 = vmatprep.mubr.f32.mxu0 %v1371
  %1673 = vmatmul.mubr.f32.gmra.mrb[0].mxu0 %v1235
  %v1674 = vpop.f32.mrb[0].mxu0
  %v1675 = vadd.f32 %v1570, %v1674
  %v1676 = vpop.f32.mrb[0].mxu0
  %1677 = vmatprep.mubr.f32.mxu0 %v1374
  %1678 = vmatmul.mubr.f32.gmra.mrb[0].mxu0 %v1241
  %v1679 = vpop.f32.mrb[0].mxu0
  %v1680 = vadd.f32 %v1575, %v1679
  %v1681 = vpop.f32.mrb[0].mxu0
  %1682 = vmatprep.mubr.f32.mxu0 %v1377
  %1683 = vmatmul.mubr.f32.gmra.mrb[0].mxu0 %v1247
  %v1684 = vpop.f32.mrb[0].mxu0
  %v1685 = vadd.f32 %v1580, %v1684
  %v1686 = vpop.f32.mrb[0].mxu0
  %1687 = vmatprep.mubr.f32.mxu0 %v1380
  %1688 = vmatmul.mubr.f32.gmra.mrb[0].mxu0 %v1253
  %v1689 = vpop.f32.mrb[0].mxu0
  %v1690 = vadd.f32 %v1585, %v1689
  %v1691 = vpop.f32.mrb[0].mxu0
  %1692 = vmatprep.mubr.f32.mxu0 %v1383
  %1693 = vmatmul.mubr.f32.gmra.mrb[0].mxu0 %v1259
  %v1694 = vpop.f32.mrb[0].mxu0
  %v1695 = vadd.f32 %v1590, %v1694
  %v1696 = vpop.f32.mrb[0].mxu0
  %1697 = vmatprep.mubr.f32.mxu0 %v1386
  %1698 = vmatmul.mubr.f32.gmra.mrb[0].mxu0 %v1265
  %v1699 = vpop.f32.mrb[0].mxu0
  %v1700 = vadd.f32 %v1595, %v1699
  %v1701 = vpop.f32.mrb[0].mxu0
  %1702 = vdwg.mxu0
  %v1703 = vmax.f32 %v1665, 0.0
  %v1704 = vmax.f32 %v1670, 0.0
  %v1705 = vmax.f32 %v1675, 0.0
  %v1706 = vmax.f32 %v1680, 0.0
  %v1707 = vmax.f32 %v1685, 0.0
  %v1708 = vmax.f32 %v1690, 0.0
  %v1709 = vmax.f32 %v1695, 0.0
  %v1710 = vmax.f32 %v1700, 0.0
  %1711 = vst [vmem:[#allocation4] sm:$0xff] %v1703
  %1712 = vst [vmem:[#allocation4 + $0x8] sm:$0xff] %v1704
  %1713 = vst [vmem:[#allocation4 + $0x10] sm:$0xff] %v1705
  %1714 = vst [vmem:[#allocation4 + $0x18] sm:$0xff] %v1706
  %1715 = vst [vmem:[#allocation4 + $0x20] sm:$0xff] %v1707
  %1716 = vst [vmem:[#allocation4 + $0x28] sm:$0xff] %v1708
  %1717 = vst [vmem:[#allocation4 + $0x30] sm:$0xff] %v1709
  %1718 = vst [vmem:[#allocation4 + $0x38] sm:$0xff] %v1710
  %v1719 = vld [vmem:[#allocation4] sm:$0xff]
  %v1720 = vld [vmem:[#allocation4 + $0x8] sm:$0xff]
  %v1721 = vld [vmem:[#allocation4 + $0x10] sm:$0xff]
  %v1722 = vld [vmem:[#allocation4 + $0x18] sm:$0xff]
  %v1723 = vld [vmem:[#allocation4 + $0x20] sm:$0xff]
  %v1724 = vld [vmem:[#allocation4 + $0x28] sm:$0xff]
  %v1725 = vld [vmem:[#allocation4 + $0x30] sm:$0xff]
  %v1726 = vld [vmem:[#allocation4 + $0x38] sm:$0xff]
  %v1727 = vld [vmem:[%s5] sm:$0xff]
  %v1728 = vld [vmem:[%s5 + $0x8] sm:$0xff]
  %v1729 = vld [vmem:[%s5 + $0x10] sm:$0xff]
  %v1730 = vld [vmem:[%s5 + $0x18] sm:$0xff]
  %v1731 = vld [vmem:[%s5 + $0x20] sm:$0xff]
  %v1732 = vld [vmem:[%s5 + $0x28] sm:$0xff]
  %v1733 = vld [vmem:[%s5 + $0x30] sm:$0xff]
  %v1734 = vld [vmem:[%s5 + $0x38] sm:$0xff]
  %v1735 = vld [vmem:[%s5 + $0x40] sm:$0xff]
  %v1736 = vld [vmem:[%s5 + $0x48] sm:$0xff]
  %v1737 = vld [vmem:[%s5 + $0x50] sm:$0xff]
  %v1738 = vld [vmem:[%s5 + $0x58] sm:$0xff]
  %v1739 = vld [vmem:[%s5 + $0x60] sm:$0xff]
  %v1740 = vld [vmem:[%s5 + $0x68] sm:$0xff]
  %v1741 = vld [vmem:[%s5 + $0x70] sm:$0xff]
  %v1742 = vld [vmem:[%s5 + $0x78] sm:$0xff]
  %v1743 = vld [vmem:[%s5 + $0x80] sm:$0xff]
  %v1744 = vld [vmem:[%s5 + $0x88] sm:$0xff]
  %v1745 = vld [vmem:[%s5 + $0x90] sm:$0xff]
  %v1746 = vld [vmem:[%s5 + $0x98] sm:$0xff]
  %v1747 = vld [vmem:[%s5 + $0xa0] sm:$0xff]
  %v1748 = vld [vmem:[%s5 + $0xa8] sm:$0xff]
  %v1749 = vld [vmem:[%s5 + $0xb0] sm:$0xff]
  %v1750 = vld [vmem:[%s5 + $0xb8] sm:$0xff]
  %v1751 = vld [vmem:[%s5 + $0xc0] sm:$0xff]
  %v1752 = vld [vmem:[%s5 + $0xc8] sm:$0xff]
  %v1753 = vld [vmem:[%s5 + $0xd0] sm:$0xff]
  %v1754 = vld [vmem:[%s5 + $0xd8] sm:$0xff]
  %v1755 = vld [vmem:[%s5 + $0xe0] sm:$0xff]
  %v1756 = vld [vmem:[%s5 + $0xe8] sm:$0xff]
  %v1757 = vld [vmem:[%s5 + $0xf0] sm:$0xff]
  %v1758 = vld [vmem:[%s5 + $0xf8] sm:$0xff]
  %v1759 = vld [vmem:[%s5 + $0x100] sm:$0xff]
  %v1760 = vld [vmem:[%s5 + $0x108] sm:$0xff]
  %v1761 = vld [vmem:[%s5 + $0x110] sm:$0xff]
  %v1762 = vld [vmem:[%s5 + $0x118] sm:$0xff]
  %v1763 = vld [vmem:[%s5 + $0x120] sm:$0xff]
  %v1764 = vld [vmem:[%s5 + $0x128] sm:$0xff]
  %v1765 = vld [vmem:[%s5 + $0x130] sm:$0xff]
  %v1766 = vld [vmem:[%s5 + $0x138] sm:$0xff]
  %v1767 = vld [vmem:[%s5 + $0x140] sm:$0xff]
  %v1768 = vld [vmem:[%s5 + $0x148] sm:$0xff]
  %v1769 = vld [vmem:[%s5 + $0x150] sm:$0xff]
  %v1770 = vld [vmem:[%s5 + $0x158] sm:$0xff]
  %v1771 = vld [vmem:[%s5 + $0x160] sm:$0xff]
  %v1772 = vld [vmem:[%s5 + $0x168] sm:$0xff]
  %v1773 = vld [vmem:[%s5 + $0x170] sm:$0xff]
  %v1774 = vld [vmem:[%s5 + $0x178] sm:$0xff]
  %v1775 = vld [vmem:[%s5 + $0x180] sm:$0xff]
  %v1776 = vld [vmem:[%s5 + $0x188] sm:$0xff]
  %v1777 = vld [vmem:[%s5 + $0x190] sm:$0xff]
  %v1778 = vld [vmem:[%s5 + $0x198] sm:$0xff]
  %v1779 = vld [vmem:[%s5 + $0x1a0] sm:$0xff]
  %v1780 = vld [vmem:[%s5 + $0x1a8] sm:$0xff]
  %v1781 = vld [vmem:[%s5 + $0x1b0] sm:$0xff]
  %v1782 = vld [vmem:[%s5 + $0x1b8] sm:$0xff]
  %v1783 = vld [vmem:[%s5 + $0x1c0] sm:$0xff]
  %v1784 = vld [vmem:[%s5 + $0x1c8] sm:$0xff]
  %v1785 = vld [vmem:[%s5 + $0x1d0] sm:$0xff]
  %v1786 = vld [vmem:[%s5 + $0x1d8] sm:$0xff]
  %v1787 = vld [vmem:[%s5 + $0x1e0] sm:$0xff]
  %v1788 = vld [vmem:[%s5 + $0x1e8] sm:$0xff]
  %v1789 = vld [vmem:[%s5 + $0x1f0] sm:$0xff]
  %v1790 = vld [vmem:[%s5 + $0x1f8] sm:$0xff]
  %v1791 = vld [vmem:[%s5 + $0x200] sm:$0xff]
  %v1792 = vld [vmem:[%s5 + $0x208] sm:$0xff]
  %v1793 = vld [vmem:[%s5 + $0x210] sm:$0xff]
  %v1794 = vld [vmem:[%s5 + $0x218] sm:$0xff]
  %v1795 = vld [vmem:[%s5 + $0x220] sm:$0xff]
  %v1796 = vld [vmem:[%s5 + $0x228] sm:$0xff]
  %v1797 = vld [vmem:[%s5 + $0x230] sm:$0xff]
  %v1798 = vld [vmem:[%s5 + $0x238] sm:$0xff]
  %v1799 = vld [vmem:[%s5 + $0x240] sm:$0xff]
  %v1800 = vld [vmem:[%s5 + $0x248] sm:$0xff]
  %v1801 = vld [vmem:[%s5 + $0x250] sm:$0xff]
  %v1802 = vld [vmem:[%s5 + $0x258] sm:$0xff]
  %v1803 = vld [vmem:[%s5 + $0x260] sm:$0xff]
  %v1804 = vld [vmem:[%s5 + $0x268] sm:$0xff]
  %v1805 = vld [vmem:[%s5 + $0x270] sm:$0xff]
  %v1806 = vld [vmem:[%s5 + $0x278] sm:$0xff]
  %v1807 = vld [vmem:[%s5 + $0x280] sm:$0xff]
  %v1808 = vld [vmem:[%s5 + $0x288] sm:$0xff]
  %v1809 = vld [vmem:[%s5 + $0x290] sm:$0xff]
  %v1810 = vld [vmem:[%s5 + $0x298] sm:$0xff]
  %v1811 = vld [vmem:[%s5 + $0x2a0] sm:$0xff]
  %v1812 = vld [vmem:[%s5 + $0x2a8] sm:$0xff]
  %v1813 = vld [vmem:[%s5 + $0x2b0] sm:$0xff]
  %v1814 = vld [vmem:[%s5 + $0x2b8] sm:$0xff]
  %v1815 = vld [vmem:[%s5 + $0x2c0] sm:$0xff]
  %v1816 = vld [vmem:[%s5 + $0x2c8] sm:$0xff]
  %v1817 = vld [vmem:[%s5 + $0x2d0] sm:$0xff]
  %v1818 = vld [vmem:[%s5 + $0x2d8] sm:$0xff]
  %v1819 = vld [vmem:[%s5 + $0x2e0] sm:$0xff]
  %v1820 = vld [vmem:[%s5 + $0x2e8] sm:$0xff]
  %v1821 = vld [vmem:[%s5 + $0x2f0] sm:$0xff]
  %v1822 = vld [vmem:[%s5 + $0x2f8] sm:$0xff]
  %v1823 = vld [vmem:[%s5 + $0x300] sm:$0xff]
  %v1824 = vld [vmem:[%s5 + $0x308] sm:$0xff]
  %v1825 = vld [vmem:[%s5 + $0x310] sm:$0xff]
  %v1826 = vld [vmem:[%s5 + $0x318] sm:$0xff]
  %v1827 = vld [vmem:[%s5 + $0x320] sm:$0xff]
  %v1828 = vld [vmem:[%s5 + $0x328] sm:$0xff]
  %v1829 = vld [vmem:[%s5 + $0x330] sm:$0xff]
  %v1830 = vld [vmem:[%s5 + $0x338] sm:$0xff]
  %v1831 = vld [vmem:[%s5 + $0x340] sm:$0xff]
  %v1832 = vld [vmem:[%s5 + $0x348] sm:$0xff]
  %v1833 = vld [vmem:[%s5 + $0x350] sm:$0xff]
  %v1834 = vld [vmem:[%s5 + $0x358] sm:$0xff]
  %v1835 = vld [vmem:[%s5 + $0x360] sm:$0xff]
  %v1836 = vld [vmem:[%s5 + $0x368] sm:$0xff]
  %v1837 = vld [vmem:[%s5 + $0x370] sm:$0xff]
  %v1838 = vld [vmem:[%s5 + $0x378] sm:$0xff]
  %v1839 = vld [vmem:[%s5 + $0x380] sm:$0xff]
  %v1840 = vld [vmem:[%s5 + $0x388] sm:$0xff]
  %v1841 = vld [vmem:[%s5 + $0x390] sm:$0xff]
  %v1842 = vld [vmem:[%s5 + $0x398] sm:$0xff]
  %v1843 = vld [vmem:[%s5 + $0x3a0] sm:$0xff]
  %v1844 = vld [vmem:[%s5 + $0x3a8] sm:$0xff]
  %v1845 = vld [vmem:[%s5 + $0x3b0] sm:$0xff]
  %v1846 = vld [vmem:[%s5 + $0x3b8] sm:$0xff]
  %v1847 = vld [vmem:[%s5 + $0x3c0] sm:$0xff]
  %v1848 = vld [vmem:[%s5 + $0x3c8] sm:$0xff]
  %v1849 = vld [vmem:[%s5 + $0x3d0] sm:$0xff]
  %v1850 = vld [vmem:[%s5 + $0x3d8] sm:$0xff]
  %v1851 = vld [vmem:[%s5 + $0x3e0] sm:$0xff]
  %v1852 = vld [vmem:[%s5 + $0x3e8] sm:$0xff]
  %v1853 = vld [vmem:[%s5 + $0x3f0] sm:$0xff]
  %v1854 = vld [vmem:[%s5 + $0x3f8] sm:$0xff]
  %v1855 = vld [vmem:[%s6] sm:$0x1]
  %v1857 = vlaneseq
  %v1858 = vshrl.u32 %v1857, 7
  %v1859 = vsub.s32 0, %v1858
  %v1860 = vrot.slane %v1855, %v1859
  %1862 = vmatprep.subr.mxu0 0.0
  %1863 = vmatpush1.msra.mxu0 %v1727
  %1864 = vmatprep.subr.mxu0 0.0
  %1865 = vmatpush1.msra.mxu0 %v1728
  %1866 = vmatprep.subr.mxu0 0.0
  %1867 = vmatpush1.msra.mxu0 %v1729
  %1868 = vmatprep.subr.mxu0 0.0
  %1869 = vmatpush1.msra.mxu0 %v1730
  %1870 = vmatprep.subr.mxu0 0.0
  %1871 = vmatpush1.msra.mxu0 %v1731
  %1872 = vmatprep.subr.mxu0 0.0
  %1873 = vmatpush1.msra.mxu0 %v1732
  %1874 = vmatprep.subr.mxu0 0.0
  %1875 = vmatpush1.msra.mxu0 %v1733
  %1876 = vmatprep.subr.mxu0 0.0
  %1877 = vmatpush1.msra.mxu0 %v1734
  %1878 = vmatprep.subr.mxu0 0.0
  %1879 = vmatpush1.msra.mxu0 %v1735
  %1880 = vmatprep.subr.mxu0 0.0
  %1881 = vmatpush1.msra.mxu0 %v1736
  %1882 = vmatprep.subr.mxu0 0.0
  %1883 = vmatpush1.msra.mxu0 %v1737
  %1884 = vmatprep.subr.mxu0 0.0
  %1885 = vmatpush1.msra.mxu0 %v1738
  %1886 = vmatprep.subr.mxu0 0.0
  %1887 = vmatpush1.msra.mxu0 %v1739
  %1888 = vmatprep.subr.mxu0 0.0
  %1889 = vmatpush1.msra.mxu0 %v1740
  %1890 = vmatprep.subr.mxu0 0.0
  %1891 = vmatpush1.msra.mxu0 %v1741
  %1892 = vmatprep.subr.mxu0 0.0
  %1893 = vmatpush1.msra.mxu0 %v1742
  %1894 = vmatprep.subr.mxu0 0.0
  %1895 = vmatpush1.msra.mxu0 %v1743
  %1896 = vmatprep.subr.mxu0 0.0
  %1897 = vmatpush1.msra.mxu0 %v1744
  %1898 = vmatprep.subr.mxu0 0.0
  %1899 = vmatpush1.msra.mxu0 %v1745
  %1900 = vmatprep.subr.mxu0 0.0
  %1901 = vmatpush1.msra.mxu0 %v1746
  %1902 = vmatprep.subr.mxu0 0.0
  %1903 = vmatpush1.msra.mxu0 %v1747
  %1904 = vmatprep.subr.mxu0 0.0
  %1905 = vmatpush1.msra.mxu0 %v1748
  %1906 = vmatprep.subr.mxu0 0.0
  %1907 = vmatpush1.msra.mxu0 %v1749
  %1908 = vmatprep.subr.mxu0 0.0
  %1909 = vmatpush1.msra.mxu0 %v1750
  %1910 = vmatprep.subr.mxu0 0.0
  %1911 = vmatpush1.msra.mxu0 %v1751
  %1912 = vmatprep.subr.mxu0 0.0
  %1913 = vmatpush1.msra.mxu0 %v1752
  %1914 = vmatprep.subr.mxu0 0.0
  %1915 = vmatpush1.msra.mxu0 %v1753
  %1916 = vmatprep.subr.mxu0 0.0
  %1917 = vmatpush1.msra.mxu0 %v1754
  %1918 = vmatprep.subr.mxu0 0.0
  %1919 = vmatpush1.msra.mxu0 %v1755
  %1920 = vmatprep.subr.mxu0 0.0
  %1921 = vmatpush1.msra.mxu0 %v1756
  %1922 = vmatprep.subr.mxu0 0.0
  %1923 = vmatpush1.msra.mxu0 %v1757
  %1924 = vmatprep.subr.mxu0 0.0
  %1925 = vmatpush1.msra.mxu0 %v1758
  %1926 = vmatprep.mubr.f32.mxu0 %v1720
  %1927 = vmatmul.mubr.f32.gmra.mrb[0].mxu0 %v1719
  %v1928 = vpop.f32.mrb[0].mxu0
  %v1929 = vadd.f32 %v1860, %v1928
  %v1930 = vpop.f32.mrb[0].mxu0
  %1931 = vdwg.mxu0
  %1932 = vmatprep.subr.mxu0 0.0
  %1933 = vmatpush1.msra.mxu0 %v1759
  %1934 = vmatprep.subr.mxu0 0.0
  %1935 = vmatpush1.msra.mxu0 %v1760
  %1936 = vmatprep.subr.mxu0 0.0
  %1937 = vmatpush1.msra.mxu0 %v1761
  %1938 = vmatprep.subr.mxu0 0.0
  %1939 = vmatpush1.msra.mxu0 %v1762
  %1940 = vmatprep.subr.mxu0 0.0
  %1941 = vmatpush1.msra.mxu0 %v1763
  %1942 = vmatprep.subr.mxu0 0.0
  %1943 = vmatpush1.msra.mxu0 %v1764
  %1944 = vmatprep.subr.mxu0 0.0
  %1945 = vmatpush1.msra.mxu0 %v1765
  %1946 = vmatprep.subr.mxu0 0.0
  %1947 = vmatpush1.msra.mxu0 %v1766
  %1948 = vmatprep.subr.mxu0 0.0
  %1949 = vmatpush1.msra.mxu0 %v1767
  %1950 = vmatprep.subr.mxu0 0.0
  %1951 = vmatpush1.msra.mxu0 %v1768
  %1952 = vmatprep.subr.mxu0 0.0
  %1953 = vmatpush1.msra.mxu0 %v1769
  %1954 = vmatprep.subr.mxu0 0.0
  %1955 = vmatpush1.msra.mxu0 %v1770
  %1956 = vmatprep.subr.mxu0 0.0
  %1957 = vmatpush1.msra.mxu0 %v1771
  %1958 = vmatprep.subr.mxu0 0.0
  %1959 = vmatpush1.msra.mxu0 %v1772
  %1960 = vmatprep.subr.mxu0 0.0
  %1961 = vmatpush1.msra.mxu0 %v1773
  %1962 = vmatprep.subr.mxu0 0.0
  %1963 = vmatpush1.msra.mxu0 %v1774
  %1964 = vmatprep.subr.mxu0 0.0
  %1965 = vmatpush1.msra.mxu0 %v1775
  %1966 = vmatprep.subr.mxu0 0.0
  %1967 = vmatpush1.msra.mxu0 %v1776
  %1968 = vmatprep.subr.mxu0 0.0
  %1969 = vmatpush1.msra.mxu0 %v1777
  %1970 = vmatprep.subr.mxu0 0.0
  %1971 = vmatpush1.msra.mxu0 %v1778
  %1972 = vmatprep.subr.mxu0 0.0
  %1973 = vmatpush1.msra.mxu0 %v1779
  %1974 = vmatprep.subr.mxu0 0.0
  %1975 = vmatpush1.msra.mxu0 %v1780
  %1976 = vmatprep.subr.mxu0 0.0
  %1977 = vmatpush1.msra.mxu0 %v1781
  %1978 = vmatprep.subr.mxu0 0.0
  %1979 = vmatpush1.msra.mxu0 %v1782
  %1980 = vmatprep.subr.mxu0 0.0
  %1981 = vmatpush1.msra.mxu0 %v1783
  %1982 = vmatprep.subr.mxu0 0.0
  %1983 = vmatpush1.msra.mxu0 %v1784
  %1984 = vmatprep.subr.mxu0 0.0
  %1985 = vmatpush1.msra.mxu0 %v1785
  %1986 = vmatprep.subr.mxu0 0.0
  %1987 = vmatpush1.msra.mxu0 %v1786
  %1988 = vmatprep.subr.mxu0 0.0
  %1989 = vmatpush1.msra.mxu0 %v1787
  %1990 = vmatprep.subr.mxu0 0.0
  %1991 = vmatpush1.msra.mxu0 %v1788
  %1992 = vmatprep.subr.mxu0 0.0
  %1993 = vmatpush1.msra.mxu0 %v1789
  %1994 = vmatprep.subr.mxu0 0.0
  %1995 = vmatpush1.msra.mxu0 %v1790
  %1996 = vmatprep.mubr.f32.mxu0 %v1722
  %1997 = vmatmul.mubr.f32.gmra.mrb[0].mxu0 %v1721
  %v1998 = vpop.f32.mrb[0].mxu0
  %v1999 = vadd.f32 %v1929, %v1998
  %v2000 = vpop.f32.mrb[0].mxu0
  %2001 = vdwg.mxu0
  %2002 = vmatprep.subr.mxu0 0.0
  %2003 = vmatpush1.msra.mxu0 %v1791
  %2004 = vmatprep.subr.mxu0 0.0
  %2005 = vmatpush1.msra.mxu0 %v1792
  %2006 = vmatprep.subr.mxu0 0.0
  %2007 = vmatpush1.msra.mxu0 %v1793
  %2008 = vmatprep.subr.mxu0 0.0
  %2009 = vmatpush1.msra.mxu0 %v1794
  %2010 = vmatprep.subr.mxu0 0.0
  %2011 = vmatpush1.msra.mxu0 %v1795
  %2012 = vmatprep.subr.mxu0 0.0
  %2013 = vmatpush1.msra.mxu0 %v1796
  %2014 = vmatprep.subr.mxu0 0.0
  %2015 = vmatpush1.msra.mxu0 %v1797
  %2016 = vmatprep.subr.mxu0 0.0
  %2017 = vmatpush1.msra.mxu0 %v1798
  %2018 = vmatprep.subr.mxu0 0.0
  %2019 = vmatpush1.msra.mxu0 %v1799
  %2020 = vmatprep.subr.mxu0 0.0
  %2021 = vmatpush1.msra.mxu0 %v1800
  %2022 = vmatprep.subr.mxu0 0.0
  %2023 = vmatpush1.msra.mxu0 %v1801
  %2024 = vmatprep.subr.mxu0 0.0
  %2025 = vmatpush1.msra.mxu0 %v1802
  %2026 = vmatprep.subr.mxu0 0.0
  %2027 = vmatpush1.msra.mxu0 %v1803
  %2028 = vmatprep.subr.mxu0 0.0
  %2029 = vmatpush1.msra.mxu0 %v1804
  %2030 = vmatprep.subr.mxu0 0.0
  %2031 = vmatpush1.msra.mxu0 %v1805
  %2032 = vmatprep.subr.mxu0 0.0
  %2033 = vmatpush1.msra.mxu0 %v1806
  %2034 = vmatprep.subr.mxu0 0.0
  %2035 = vmatpush1.msra.mxu0 %v1807
  %2036 = vmatprep.subr.mxu0 0.0
  %2037 = vmatpush1.msra.mxu0 %v1808
  %2038 = vmatprep.subr.mxu0 0.0
  %2039 = vmatpush1.msra.mxu0 %v1809
  %2040 = vmatprep.subr.mxu0 0.0
  %2041 = vmatpush1.msra.mxu0 %v1810
  %2042 = vmatprep.subr.mxu0 0.0
  %2043 = vmatpush1.msra.mxu0 %v1811
  %2044 = vmatprep.subr.mxu0 0.0
  %2045 = vmatpush1.msra.mxu0 %v1812
  %2046 = vmatprep.subr.mxu0 0.0
  %2047 = vmatpush1.msra.mxu0 %v1813
  %2048 = vmatprep.subr.mxu0 0.0
  %2049 = vmatpush1.msra.mxu0 %v1814
  %2050 = vmatprep.subr.mxu0 0.0
  %2051 = vmatpush1.msra.mxu0 %v1815
  %2052 = vmatprep.subr.mxu0 0.0
  %2053 = vmatpush1.msra.mxu0 %v1816
  %2054 = vmatprep.subr.mxu0 0.0
  %2055 = vmatpush1.msra.mxu0 %v1817
  %2056 = vmatprep.subr.mxu0 0.0
  %2057 = vmatpush1.msra.mxu0 %v1818
  %2058 = vmatprep.subr.mxu0 0.0
  %2059 = vmatpush1.msra.mxu0 %v1819
  %2060 = vmatprep.subr.mxu0 0.0
  %2061 = vmatpush1.msra.mxu0 %v1820
  %2062 = vmatprep.subr.mxu0 0.0
  %2063 = vmatpush1.msra.mxu0 %v1821
  %2064 = vmatprep.subr.mxu0 0.0
  %2065 = vmatpush1.msra.mxu0 %v1822
  %2066 = vmatprep.mubr.f32.mxu0 %v1724
  %2067 = vmatmul.mubr.f32.gmra.mrb[0].mxu0 %v1723
  %v2068 = vpop.f32.mrb[0].mxu0
  %v2069 = vadd.f32 %v1999, %v2068
  %v2070 = vpop.f32.mrb[0].mxu0
  %2071 = vdwg.mxu0
  %2072 = vmatprep.subr.mxu0 0.0
  %2073 = vmatpush1.msra.mxu0 %v1823
  %2074 = vmatprep.subr.mxu0 0.0
  %2075 = vmatpush1.msra.mxu0 %v1824
  %2076 = vmatprep.subr.mxu0 0.0
  %2077 = vmatpush1.msra.mxu0 %v1825
  %2078 = vmatprep.subr.mxu0 0.0
  %2079 = vmatpush1.msra.mxu0 %v1826
  %2080 = vmatprep.subr.mxu0 0.0
  %2081 = vmatpush1.msra.mxu0 %v1827
  %2082 = vmatprep.subr.mxu0 0.0
  %2083 = vmatpush1.msra.mxu0 %v1828
  %2084 = vmatprep.subr.mxu0 0.0
  %2085 = vmatpush1.msra.mxu0 %v1829
  %2086 = vmatprep.subr.mxu0 0.0
  %2087 = vmatpush1.msra.mxu0 %v1830
  %2088 = vmatprep.subr.mxu0 0.0
  %2089 = vmatpush1.msra.mxu0 %v1831
  %2090 = vmatprep.subr.mxu0 0.0
  %2091 = vmatpush1.msra.mxu0 %v1832
  %2092 = vmatprep.subr.mxu0 0.0
  %2093 = vmatpush1.msra.mxu0 %v1833
  %2094 = vmatprep.subr.mxu0 0.0
  %2095 = vmatpush1.msra.mxu0 %v1834
  %2096 = vmatprep.subr.mxu0 0.0
  %2097 = vmatpush1.msra.mxu0 %v1835
  %2098 = vmatprep.subr.mxu0 0.0
  %2099 = vmatpush1.msra.mxu0 %v1836
  %2100 = vmatprep.subr.mxu0 0.0
  %2101 = vmatpush1.msra.mxu0 %v1837
  %2102 = vmatprep.subr.mxu0 0.0
  %2103 = vmatpush1.msra.mxu0 %v1838
  %2104 = vmatprep.subr.mxu0 0.0
  %2105 = vmatpush1.msra.mxu0 %v1839
  %2106 = vmatprep.subr.mxu0 0.0
  %2107 = vmatpush1.msra.mxu0 %v1840
  %2108 = vmatprep.subr.mxu0 0.0
  %2109 = vmatpush1.msra.mxu0 %v1841
  %2110 = vmatprep.subr.mxu0 0.0
  %2111 = vmatpush1.msra.mxu0 %v1842
  %2112 = vmatprep.subr.mxu0 0.0
  %2113 = vmatpush1.msra.mxu0 %v1843
  %2114 = vmatprep.subr.mxu0 0.0
  %2115 = vmatpush1.msra.mxu0 %v1844
  %2116 = vmatprep.subr.mxu0 0.0
  %2117 = vmatpush1.msra.mxu0 %v1845
  %2118 = vmatprep.subr.mxu0 0.0
  %2119 = vmatpush1.msra.mxu0 %v1846
  %2120 = vmatprep.subr.mxu0 0.0
  %2121 = vmatpush1.msra.mxu0 %v1847
  %2122 = vmatprep.subr.mxu0 0.0
  %2123 = vmatpush1.msra.mxu0 %v1848
  %2124 = vmatprep.subr.mxu0 0.0
  %2125 = vmatpush1.msra.mxu0 %v1849
  %2126 = vmatprep.subr.mxu0 0.0
  %2127 = vmatpush1.msra.mxu0 %v1850
  %2128 = vmatprep.subr.mxu0 0.0
  %2129 = vmatpush1.msra.mxu0 %v1851
  %2130 = vmatprep.subr.mxu0 0.0
  %2131 = vmatpush1.msra.mxu0 %v1852
  %2132 = vmatprep.subr.mxu0 0.0
  %2133 = vmatpush1.msra.mxu0 %v1853
  %2134 = vmatprep.subr.mxu0 0.0
  %2135 = vmatpush1.msra.mxu0 %v1854
  %2136 = vmatprep.mubr.f32.mxu0 %v1726
  %2137 = vmatmul.mubr.f32.gmra.mrb[0].mxu0 %v1725
  %v2138 = vpop.f32.mrb[0].mxu0
  %v2139 = vadd.f32 %v2069, %v2138
  %v2140 = vpop.f32.mrb[0].mxu0
  %2141 = vdwg.mxu0
  %v2142 = vmax.f32 %v2139, 0.0
  %v2143 = vld [vmem:[%s7] sm:$0xff]
  %v2144 = vld [vmem:[%s7 + $0x8] sm:$0xff]
  %v2145 = vld [vmem:[%s7 + $0x10] sm:$0xff]
  %v2146 = vld [vmem:[%s7 + $0x18] sm:$0xff]
  %v2147 = vld [vmem:[%s7 + $0x20] sm:$0xff]
  %v2148 = vld [vmem:[%s7 + $0x28] sm:$0xff]
  %v2149 = vld [vmem:[%s7 + $0x30] sm:$0xff]
  %v2150 = vld [vmem:[%s7 + $0x38] sm:$0xff]
  %v2151 = vld [vmem:[%s7 + $0x40] sm:$0xff]
  %v2152 = vld [vmem:[%s7 + $0x48] sm:$0xff]
  %v2153 = vld [vmem:[%s7 + $0x50] sm:$0xff]
  %v2154 = vld [vmem:[%s7 + $0x58] sm:$0xff]
  %v2155 = vld [vmem:[%s7 + $0x60] sm:$0xff]
  %v2156 = vld [vmem:[%s7 + $0x68] sm:$0xff]
  %v2157 = vld [vmem:[%s7 + $0x70] sm:$0xff]
  %v2158 = vld [vmem:[%s8] sm:$0x1]
  %v2160 = vlaneseq
  %v2161 = vshrl.u32 %v2160, 7
  %v2162 = vsub.s32 0, %v2161
  %v2163 = vrot.slane %v2158, %v2162
  %vm2165 = vcmask 982016
  %v2167 = vsel %vm2165, %v2142, 0
  %2169 = vmatprep.subr.mxu0 0.0
  %2170 = vmatpush1.msra.mxu0 %v2143
  %2171 = vmatprep.subr.mxu0 0.0
  %2172 = vmatpush1.msra.mxu0 %v2144
  %2173 = vmatprep.subr.mxu0 0.0
  %2174 = vmatpush1.msra.mxu0 %v2145
  %2175 = vmatprep.subr.mxu0 0.0
  %2176 = vmatpush1.msra.mxu0 %v2146
  %2177 = vmatprep.subr.mxu0 0.0
  %2178 = vmatpush1.msra.mxu0 %v2147
  %2179 = vmatprep.subr.mxu0 0.0
  %2180 = vmatpush1.msra.mxu0 %v2148
  %2181 = vmatprep.subr.mxu0 0.0
  %2182 = vmatpush1.msra.mxu0 %v2149
  %2183 = vmatprep.subr.mxu0 0.0
  %2184 = vmatpush1.msra.mxu0 %v2150
  %2185 = vmatprep.subr.mxu0 0.0
  %2186 = vmatpush1.msra.mxu0 %v2151
  %2187 = vmatprep.subr.mxu0 0.0
  %2188 = vmatpush1.msra.mxu0 %v2152
  %2189 = vmatprep.subr.mxu0 0.0
  %2190 = vmatpush1.msra.mxu0 %v2153
  %2191 = vmatprep.subr.mxu0 0.0
  %2192 = vmatpush1.msra.mxu0 %v2154
  %2193 = vmatprep.subr.mxu0 0.0
  %2194 = vmatpush1.msra.mxu0 %v2155
  %2195 = vmatprep.subr.mxu0 0.0
  %2196 = vmatpush1.msra.mxu0 %v2156
  %2197 = vmatprep.subr.mxu0 0.0
  %2198 = vmatpush1.msra.mxu0 %v2157
  %2199 = vmatprep.subr.mxu0 0.0
  %2200 = vmatpush1.msra.mxu0 0.0
  %2201 = vmatprep.subr.mxu0 0.0
  %2202 = vmatpush1.msra.mxu0 0.0
  %2203 = vmatprep.subr.mxu0 0.0
  %2204 = vmatpush1.msra.mxu0 0.0
  %2205 = vmatprep.subr.mxu0 0.0
  %2206 = vmatpush1.msra.mxu0 0.0
  %2207 = vmatprep.subr.mxu0 0.0
  %2208 = vmatpush1.msra.mxu0 0.0
  %2209 = vmatprep.subr.mxu0 0.0
  %2210 = vmatpush1.msra.mxu0 0.0
  %2211 = vmatprep.subr.mxu0 0.0
  %2212 = vmatpush1.msra.mxu0 0.0
  %2213 = vmatprep.subr.mxu0 0.0
  %2214 = vmatpush1.msra.mxu0 0.0
  %2215 = vmatprep.subr.mxu0 0.0
  %2216 = vmatpush1.msra.mxu0 0.0
  %2217 = vmatprep.subr.mxu0 0.0
  %2218 = vmatpush1.msra.mxu0 0.0
  %2219 = vmatprep.subr.mxu0 0.0
  %2220 = vmatpush1.msra.mxu0 0.0
  %2221 = vmatprep.subr.mxu0 0.0
  %2222 = vmatpush1.msra.mxu0 0.0
  %2223 = vmatprep.subr.mxu0 0.0
  %2224 = vmatpush1.msra.mxu0 0.0
  %2225 = vmatprep.subr.mxu0 0.0
  %2226 = vmatpush1.msra.mxu0 0.0
  %2227 = vmatprep.subr.mxu0 0.0
  %2228 = vmatpush1.msra.mxu0 0.0
  %2229 = vmatprep.subr.mxu0 0.0
  %2230 = vmatpush1.msra.mxu0 0.0
  %2231 = vmatprep.subr.mxu0 0.0
  %2232 = vmatpush1.msra.mxu0 0.0
  %2233 = vmatprep.mubr.f32.mxu0 0.0
  %2234 = vmatmul.mubr.f32.gmra.mrb[0].mxu0 %v2167
  %v2235 = vpop.f32.mrb[0].mxu0
  %v2236 = vadd.f32 %v2163, %v2235
  %v2237 = vpop.f32.mrb[0].mxu0
  %2238 = vdwg.mxu0
  %v2239 = vmax.f32 %v2236, 0.0
  %v2240 = vld [vmem:[%s9] sm:$0xff]
  %v2241 = vld [vmem:[%s9 + $0x8] sm:$0xff]
  %v2242 = vld [vmem:[%s9 + $0x10] sm:$0xff]
  %v2243 = vld [vmem:[%s9 + $0x18] sm:$0xff]
  %v2244 = vld [vmem:[%s9 + $0x20] sm:$0xff]
  %v2245 = vld [vmem:[%s9 + $0x28] sm:$0xff]
  %v2246 = vld [vmem:[%s9 + $0x30] sm:$0xff]
  %v2247 = vld [vmem:[%s9 + $0x38] sm:$0xff]
  %v2248 = vld [vmem:[%s9 + $0x40] sm:$0xff]
  %v2249 = vld [vmem:[%s9 + $0x48] sm:$0xff]
  %v2250 = vld [vmem:[%s9 + $0x50] sm:$0xf]
  %v2251 = vld [vmem:[%s10] sm:$0x1]
  %v2253 = vlaneseq
  %v2254 = vshrl.u32 %v2253, 7
  %v2255 = vsub.s32 0, %v2254
  %v2256 = vrot.slane %v2251, %v2255
  %vm2258 = vcmask 687104
  %v2260 = vsel %vm2258, %v2239, 0
  %vm2262 = vcmask 1043456
  %v2264 = vsel %vm2262, %v2250, 0
  %2266 = vmatprep.subr.mxu0 0.0
  %2267 = vmatpush1.msra.mxu0 %v2240
  %2268 = vmatprep.subr.mxu0 0.0
  %2269 = vmatpush1.msra.mxu0 %v2241
  %2270 = vmatprep.subr.mxu0 0.0
  %2271 = vmatpush1.msra.mxu0 %v2242
  %2272 = vmatprep.subr.mxu0 0.0
  %2273 = vmatpush1.msra.mxu0 %v2243
  %2274 = vmatprep.subr.mxu0 0.0
  %2275 = vmatpush1.msra.mxu0 %v2244
  %2276 = vmatprep.subr.mxu0 0.0
  %2277 = vmatpush1.msra.mxu0 %v2245
  %2278 = vmatprep.subr.mxu0 0.0
  %2279 = vmatpush1.msra.mxu0 %v2246
  %2280 = vmatprep.subr.mxu0 0.0
  %2281 = vmatpush1.msra.mxu0 %v2247
  %2282 = vmatprep.subr.mxu0 0.0
  %2283 = vmatpush1.msra.mxu0 %v2248
  %2284 = vmatprep.subr.mxu0 0.0
  %2285 = vmatpush1.msra.mxu0 %v2249
  %2286 = vmatprep.subr.mxu0 0.0
  %2287 = vmatpush1.msra.mxu0 %v2264
  %2288 = vmatprep.subr.mxu0 0.0
  %2289 = vmatpush1.msra.mxu0 0.0
  %2290 = vmatprep.subr.mxu0 0.0
  %2291 = vmatpush1.msra.mxu0 0.0
  %2292 = vmatprep.subr.mxu0 0.0
  %2293 = vmatpush1.msra.mxu0 0.0
  %2294 = vmatprep.subr.mxu0 0.0
  %2295 = vmatpush1.msra.mxu0 0.0
  %2296 = vmatprep.subr.mxu0 0.0
  %2297 = vmatpush1.msra.mxu0 0.0
  %2298 = vmatprep.subr.mxu0 0.0
  %2299 = vmatpush1.msra.mxu0 0.0
  %2300 = vmatprep.subr.mxu0 0.0
  %2301 = vmatpush1.msra.mxu0 0.0
  %2302 = vmatprep.subr.mxu0 0.0
  %2303 = vmatpush1.msra.mxu0 0.0
  %2304 = vmatprep.subr.mxu0 0.0
  %2305 = vmatpush1.msra.mxu0 0.0
  %2306 = vmatprep.subr.mxu0 0.0
  %2307 = vmatpush1.msra.mxu0 0.0
  %2308 = vmatprep.subr.mxu0 0.0
  %2309 = vmatpush1.msra.mxu0 0.0
  %2310 = vmatprep.subr.mxu0 0.0
  %2311 = vmatpush1.msra.mxu0 0.0
  %2312 = vmatprep.subr.mxu0 0.0
  %2313 = vmatpush1.msra.mxu0 0.0
  %2314 = vmatprep.subr.mxu0 0.0
  %2315 = vmatpush1.msra.mxu0 0.0
  %2316 = vmatprep.subr.mxu0 0.0
  %2317 = vmatpush1.msra.mxu0 0.0
  %2318 = vmatprep.subr.mxu0 0.0
  %2319 = vmatpush1.msra.mxu0 0.0
  %2320 = vmatprep.subr.mxu0 0.0
  %2321 = vmatpush1.msra.mxu0 0.0
  %2322 = vmatprep.subr.mxu0 0.0
  %2323 = vmatpush1.msra.mxu0 0.0
  %2324 = vmatprep.subr.mxu0 0.0
  %2325 = vmatpush1.msra.mxu0 0.0
  %2326 = vmatprep.subr.mxu0 0.0
  %2327 = vmatpush1.msra.mxu0 0.0
  %2328 = vmatprep.subr.mxu0 0.0
  %2329 = vmatpush1.msra.mxu0 0.0
  %2330 = vmatprep.mubr.f32.mxu0 0.0
  %2331 = vmatmul.mubr.f32.gmra.mrb[0].mxu0 %v2260
  %v2332 = vpop.f32.mrb[0].mxu0
  %v2333 = vadd.f32 %v2256, %v2332
  %v2334 = vpop.f32.mrb[0].mxu0
  %2335 = vdwg.mxu0
  %2336 = vst [vmem:[%s11] sm:$0xff] %v2333
  // Predicated region
  $region46: #{charcnn_pallas.1} parent=0 // pred_check
    _
  $region47: #{charcnn_pallas.1} parent=0 // pred_check_branch
    %2338 = sbr.rel (0) target = $region49
  $region48: #{charcnn_pallas.1} parent=0 // pred_region
    _
  $region49: #{charcnn_pallas.1} parent=0 // pred_fallthru
    _
  // Predicated region
  $region50: #{charcnn_pallas.1} parent=0 // pred_check
    _
  $region51: #{charcnn_pallas.1} parent=0 // pred_check_branch
    %2340 = sbr.rel (0) target = $region53
  $region52: #{charcnn_pallas.1} parent=0 // pred_region
    _
  $region53: #{charcnn_pallas.1} parent=0 // pred_fallthru
    _

</llo_original>
